<compile_context>
chip_gen: v7x
topology: tpu7x:2x2x1
jax: 0.10.0
libtpu: 0.0.40
codegen_flags: <defaults>
</compile_context>

<pallas_src>
from functools import partial

import jax
import jax.numpy as jnp
from jax.experimental import pallas as pl
from jax.experimental.pallas import tpu as pltpu


def mhsa_kernel(x_ref, w_ref, b_ref, o_ref, *, n_heads, d_head):
    bb, n, d = x_ref.shape

    # ---- fused QKV projection: one MXU matmul (scale pre-folded into Q cols) --
    x2 = x_ref[...].reshape(bb * n, d)                       # merge leading dims only
    qkv = jnp.dot(x2, w_ref[...], preferred_element_type=jnp.float32) + b_ref[...]
    # qkv: (bb*n, 3D), columns = [q | k | v], each D wide, head-major within D.

    # ---- 'b n (h dh)' -> '(h b) n dh' slab assembly (once per block) ----------
    # Major-axis concat of the per-head lane slices; done once so the attention
    # math below is fully batched over every (head, batch) pair.
    def split_heads(col0):
        return jnp.concatenate(
            [qkv[:, col0 + i * d_head: col0 + (i + 1) * d_head].reshape(bb, n, d_head)
             for i in range(n_heads)],
            axis=0)                                          # (h*bb, n, dh)

    qh = split_heads(0)
    kh = split_heads(d)
    vh = split_heads(2 * d)

    # ---- batched attention over all heads -------------------------------------
    logits = jnp.einsum('bqd,bkd->bqk', qh, kh,
                        preferred_element_type=jnp.float32)  # (h*bb, n, n)
    m = jnp.max(logits, axis=-1, keepdims=True)
    p = jnp.exp(logits - m)
    # EUP approximate reciprocal; 1/l folded into the small (h*bb, n, dh) output.
    inv_l = pl.reciprocal(jnp.sum(p, axis=-1, keepdims=True), approx=True)
    out = jnp.einsum('bqk,bkd->bqd', p, vh,
                     preferred_element_type=jnp.float32) * inv_l  # (h*bb, n, dh)

    # ---- '(h b) n dh' -> 'b n (h dh)': one lane-axis concat, one dense store --
    o_ref[...] = jnp.concatenate(
        [out[i * bb:(i + 1) * bb] for i in range(n_heads)],
        axis=-1).astype(o_ref.dtype)


def fuse_qkv_params(wq, bq, wk, bk, wv, bv, *, num_head):
    """One-time parameter prep (outside the per-forward hot path).

    nn.Linear stores W as (out, in) and computes x @ W^T + b.  Fuse the three
    projections into a single (D, 3D) operand / (1, 3D) bias row, and fold the
    1/sqrt(d_head) softmax scale into the Q columns (numerically equivalent to
    q @ (k^T * scale) in f32).
    """
    D = wq.shape[0]
    n_heads = D // num_head
    d_head = D // n_heads
    scale = float(d_head) ** -0.5
    w_qkv = jnp.concatenate([wq.T * scale, wk.T, wv.T], axis=1)   # (D, 3D)
    b_qkv = jnp.concatenate([bq * scale, bk, bv])[None, :]        # (1, 3D)
    return w_qkv, b_qkv


def _block_vmem_bytes(bb, N, D, n_heads):
    """Generous per-grid-step VMEM footprint estimate (f32)."""
    f32 = 4
    act = bb * N * D * f32                         # one x/out-sized slab
    logits = bb * n_heads * N * N * f32            # one (h*bb, n, n) slab
    weights = (3 * D * D + 3 * D) * f32
    # x + out double-buffered (4x act) + qkv & head slabs & assembly (~8x act)
    # + logits + exp(p) + weights.
    return 4 * act + 8 * act + 2 * logits + weights


def _device_kind():
    try:
        return jax.devices()[0].device_kind.lower()
    except Exception:
        return ""


def _pick_block_b(B, N, D, n_heads, *, num_tc, row_target,
                  vmem_budget=32 * 2**20):
    """Batch elements per grid step.

    Target enough rows of projection work per step to amortize per-step
    overhead and keep the MXU fed, but only keep >= num_tc grid steps on
    multi-TensorCore chips (megacore); on single-TC chips take the biggest
    block that fits the VMEM budget.
    """
    if N % 8 != 0:
        return 1                                   # keep the in-kernel reshape trivial
    target = max(1, -(-row_target // N))           # cdiv(row_target, N) batch rows
    if num_tc >= 2 and B >= num_tc:
        target = min(target, max(1, B // num_tc))  # >= num_tc steps for 'parallel' axis
    target = min(target, B)
    best = 1
    for bb in range(1, target + 1):
        if B % bb == 0 and _block_vmem_bytes(bb, N, D, n_heads) <= vmem_budget:
            best = bb
    return best


def custom_mhsa(x, w_qkv, b_qkv, *, num_head, block_b=None):
    """x: (B, N, D); w_qkv: (D, 3D) fused/pre-scaled weights; b_qkv: (1, 3D)."""
    B, N, D = x.shape
    assert D % num_head == 0, "dim must be divisible by num_head"
    n_heads = D // num_head                        # mirrors module: n_heads = dim // num_head
    d_head = D // n_heads                          # per-head dim (= num_head)

    kind = _device_kind()
    num_tc = 2 if any(g in kind for g in ("v7", "v4", "v5p")) else 1
    row_target = 128 if ("v5e" in kind or "v5 lite" in kind or "v5lite" in kind) else 256

    if block_b is None:
        block_b = _pick_block_b(B, N, D, n_heads, num_tc=num_tc, row_target=row_target)
    assert B % block_b == 0

    vmem_limit = int(min(64 * 2**20,
                         max(32 * 2**20, 2 * _block_vmem_bytes(block_b, N, D, n_heads))))

    kernel = partial(mhsa_kernel, n_heads=n_heads, d_head=d_head)

    return pl.pallas_call(
        kernel,
        out_shape=jax.ShapeDtypeStruct((B, N, D), x.dtype),
        grid_spec=pltpu.PrefetchScalarGridSpec(
            num_scalar_prefetch=0,
            grid=(B // block_b,),
            in_specs=[
                pl.BlockSpec((block_b, N, D), lambda b: (b, 0, 0)),      # x block
                pl.BlockSpec((D, 3 * D), lambda b: (0, 0),
                             pipeline_mode=pl.Buffered(1)),              # fused Wqkv^T (const)
                pl.BlockSpec((1, 3 * D), lambda b: (0, 0),
                             pipeline_mode=pl.Buffered(1)),              # fused bias (const)
            ],
            out_specs=pl.BlockSpec((block_b, N, D), lambda b: (b, 0, 0)),
        ),
        compiler_params=pltpu.CompilerParams(
            dimension_semantics=("parallel",),
            vmem_limit_bytes=vmem_limit),
    )(x, w_qkv, b_qkv)


def mhsa_reference(x, wq, bq, wk, bk, wv, bv, *, num_head):
    """Pure-JAX reference mirroring the PyTorch forward exactly."""
    B, N, D = x.shape
    n_heads = D // num_head
    d_head = D // n_heads
    scale = float(d_head) ** -0.5

    q = x @ wq.T + bq
    k = x @ wk.T + bk
    v = x @ wv.T + bv

    def split(t):                                                   # 'b n (h d) -> b h n d'
        return t.reshape(B, N, n_heads, d_head).transpose(0, 2, 1, 3)

    q, k, v = split(q), split(k), split(v)
    logits = q @ (jnp.swapaxes(k, -1, -2) * scale)
    attn = jax.nn.softmax(logits, axis=-1)
    out = attn @ v
    return out.transpose(0, 2, 1, 3).reshape(B, N, D)               # 'b h n d -> b n (h d)'


if __name__ == "__main__":
    # Small shapes consistent with the module: dim=32, num_head=8
    #   → n_heads = 32 // 8 = 4, per-head dim = 8.
    B, N, D, NUM_HEAD = 2, 8, 32, 8

    key = jax.random.PRNGKey(0)
    kx, kwq, kbq, kwk, kbk, kwv, kbv = jax.random.split(key, 7)

    x  = jax.random.normal(kx,  (B, N, D), dtype=jnp.float32)
    wq = jax.random.normal(kwq, (D, D), dtype=jnp.float32) * 0.1
    bq = jax.random.normal(kbq, (D,),   dtype=jnp.float32) * 0.1
    wk = jax.random.normal(kwk, (D, D), dtype=jnp.float32) * 0.1
    bk = jax.random.normal(kbk, (D,),   dtype=jnp.float32) * 0.1
    wv = jax.random.normal(kwv, (D, D), dtype=jnp.float32) * 0.1
    bv = jax.random.normal(kbv, (D,),   dtype=jnp.float32) * 0.1

    # One-time parameter fusion (scale folded into Q columns), outside hot path.
    w_qkv, b_qkv = fuse_qkv_params(wq, bq, wk, bk, wv, bv, num_head=NUM_HEAD)

    out = custom_mhsa(x, w_qkv, b_qkv, num_head=NUM_HEAD)
    out = jax.block_until_ready(out)

    ref = mhsa_reference(x, wq, bq, wk, bk, wv, bv, num_head=NUM_HEAD)
    assert out.shape == (B, N, D)
    # Tolerance loosened vs exact division: softmax normalization uses the EUP
    # approximate reciprocal (pl.reciprocal(..., approx=True)).
    assert jnp.allclose(out, ref, rtol=2e-3, atol=2e-3), "Pallas output mismatch vs reference"

    print("KERNEL_OK")
</pallas_src>

<mosaic_0001>
module attributes {stable_mosaic.version = 11 : i64} {
  func.func @mhsa_kernel(%arg0: i32, %arg1: memref<2x8x32xf32, #tpu.memory_space<vmem>>, %arg2: memref<32x96xf32, #tpu.memory_space<vmem>>, %arg3: memref<1x96xf32, #tpu.memory_space<vmem>>, %arg4: memref<2x8x32xf32, #tpu.memory_space<vmem>>) attributes {dimension_semantics = [#tpu.dimension_semantics<parallel>], iteration_bounds = array<i64: 1>, scalar_prefetch = 0 : i64, scratch_operands = 0 : i64, tpu.core_type = #tpu.core_type<tc>, window_params = [{transform_indices = @transform_0, window_bounds = array<i64: 2, 8, 32>}, {pipeline_mode = #tpu.pipeline_mode<synchronous>, transform_indices = @transform_1, window_bounds = array<i64: 32, 96>}, {pipeline_mode = #tpu.pipeline_mode<synchronous>, transform_indices = @transform_2, window_bounds = array<i64: 1, 96>}, {transform_indices = @transform_3, window_bounds = array<i64: 2, 8, 32>}]} {
    %c0 = arith.constant 0 : index
    %c0_0 = arith.constant 0 : index
    %c0_1 = arith.constant 0 : index
    %0 = vector.load %arg1[%c0, %c0_0, %c0_1] : memref<2x8x32xf32, #tpu.memory_space<vmem>>, vector<2x8x32xf32>
    %1 = vector.shape_cast %0 : vector<2x8x32xf32> to vector<16x32xf32>
    %c0_2 = arith.constant 0 : index
    %c0_3 = arith.constant 0 : index
    %2 = vector.load %arg2[%c0_2, %c0_3] : memref<32x96xf32, #tpu.memory_space<vmem>>, vector<32x96xf32>
    %cst = arith.constant dense<0.000000e+00> : vector<16x96xf32>
    %3 = tpu.matmul %1, %2, %cst {dimension_numbers = #tpu.dot_dimension_numbers<[1], [0], [0], [1], [0, 0, 1, 1], [], []>} : vector<16x32xf32>, vector<32x96xf32>, vector<16x96xf32> -> vector<16x96xf32>
    %c0_4 = arith.constant 0 : index
    %c0_5 = arith.constant 0 : index
    %4 = vector.load %arg3[%c0_4, %c0_5] : memref<1x96xf32, #tpu.memory_space<vmem>>, vector<1x96xf32>
    %5 = vector.broadcast %4 : vector<1x96xf32> to vector<16x96xf32>
    %6 = arith.addf %3, %5 : vector<16x96xf32>
    %7 = vector.extract_strided_slice %6 {offsets = [0, 0], sizes = [16, 8], strides = [1, 1]} : vector<16x96xf32> to vector<16x8xf32>
    %8 = vector.shape_cast %7 : vector<16x8xf32> to vector<2x8x8xf32>
    %9 = vector.extract_strided_slice %6 {offsets = [0, 8], sizes = [16, 8], strides = [1, 1]} : vector<16x96xf32> to vector<16x8xf32>
    %10 = vector.shape_cast %9 : vector<16x8xf32> to vector<2x8x8xf32>
    %11 = vector.extract_strided_slice %6 {offsets = [0, 16], sizes = [16, 8], strides = [1, 1]} : vector<16x96xf32> to vector<16x8xf32>
    %12 = vector.shape_cast %11 : vector<16x8xf32> to vector<2x8x8xf32>
    %13 = vector.extract_strided_slice %6 {offsets = [0, 24], sizes = [16, 8], strides = [1, 1]} : vector<16x96xf32> to vector<16x8xf32>
    %14 = vector.shape_cast %13 : vector<16x8xf32> to vector<2x8x8xf32>
    %15 = tpu.concatenate %8, %10, %12, %14 in 0 : vector<2x8x8xf32>, vector<2x8x8xf32>, vector<2x8x8xf32>, vector<2x8x8xf32> -> vector<8x8x8xf32>
    %16 = vector.extract_strided_slice %6 {offsets = [0, 32], sizes = [16, 8], strides = [1, 1]} : vector<16x96xf32> to vector<16x8xf32>
    %17 = vector.shape_cast %16 : vector<16x8xf32> to vector<2x8x8xf32>
    %18 = vector.extract_strided_slice %6 {offsets = [0, 40], sizes = [16, 8], strides = [1, 1]} : vector<16x96xf32> to vector<16x8xf32>
    %19 = vector.shape_cast %18 : vector<16x8xf32> to vector<2x8x8xf32>
    %20 = vector.extract_strided_slice %6 {offsets = [0, 48], sizes = [16, 8], strides = [1, 1]} : vector<16x96xf32> to vector<16x8xf32>
    %21 = vector.shape_cast %20 : vector<16x8xf32> to vector<2x8x8xf32>
    %22 = vector.extract_strided_slice %6 {offsets = [0, 56], sizes = [16, 8], strides = [1, 1]} : vector<16x96xf32> to vector<16x8xf32>
    %23 = vector.shape_cast %22 : vector<16x8xf32> to vector<2x8x8xf32>
    %24 = tpu.concatenate %17, %19, %21, %23 in 0 : vector<2x8x8xf32>, vector<2x8x8xf32>, vector<2x8x8xf32>, vector<2x8x8xf32> -> vector<8x8x8xf32>
    %25 = vector.extract_strided_slice %6 {offsets = [0, 64], sizes = [16, 8], strides = [1, 1]} : vector<16x96xf32> to vector<16x8xf32>
    %26 = vector.shape_cast %25 : vector<16x8xf32> to vector<2x8x8xf32>
    %27 = vector.extract_strided_slice %6 {offsets = [0, 72], sizes = [16, 8], strides = [1, 1]} : vector<16x96xf32> to vector<16x8xf32>
    %28 = vector.shape_cast %27 : vector<16x8xf32> to vector<2x8x8xf32>
    %29 = vector.extract_strided_slice %6 {offsets = [0, 80], sizes = [16, 8], strides = [1, 1]} : vector<16x96xf32> to vector<16x8xf32>
    %30 = vector.shape_cast %29 : vector<16x8xf32> to vector<2x8x8xf32>
    %31 = vector.extract_strided_slice %6 {offsets = [0, 88], sizes = [16, 8], strides = [1, 1]} : vector<16x96xf32> to vector<16x8xf32>
    %32 = vector.shape_cast %31 : vector<16x8xf32> to vector<2x8x8xf32>
    %33 = tpu.concatenate %26, %28, %30, %32 in 0 : vector<2x8x8xf32>, vector<2x8x8xf32>, vector<2x8x8xf32>, vector<2x8x8xf32> -> vector<8x8x8xf32>
    "tpu.trace_start"() <{level = 10 : i32, message = "bqd,bkd->bqk"}> : () -> ()
    %cst_6 = arith.constant dense<0.000000e+00> : vector<8x8x8xf32>
    %34 = tpu.matmul %15, %24, %cst_6 {dimension_numbers = #tpu.dot_dimension_numbers<[2], [2], [1], [1], [0, 0, 0, 1, 1, 1], [0], [0]>} : vector<8x8x8xf32>, vector<8x8x8xf32>, vector<8x8x8xf32> -> vector<8x8x8xf32>
    "tpu.trace_stop"() : () -> ()
    %cst_7 = arith.constant dense<0xFF800000> : vector<8x8xf32>
    %35 = vector.multi_reduction <maximumf>, %34, %cst_7 [2] : vector<8x8x8xf32> to vector<8x8xf32>
    %36 = vector.shape_cast %35 : vector<8x8xf32> to vector<8x8x1xf32>
    %37 = vector.broadcast %36 : vector<8x8x1xf32> to vector<8x8x8xf32>
    %38 = arith.subf %34, %37 : vector<8x8x8xf32>
    %39 = math.exp %38 : vector<8x8x8xf32>
    %cst_8 = arith.constant dense<0.000000e+00> : vector<8x8xf32>
    %40 = vector.multi_reduction <add>, %39, %cst_8 [2] : vector<8x8x8xf32> to vector<8x8xf32>
    %41 = vector.shape_cast %40 : vector<8x8xf32> to vector<8x8x1xf32>
    %42 = tpu.reciprocal %41 {approx = true} : vector<8x8x1xf32> -> vector<8x8x1xf32>
    "tpu.trace_start"() <{level = 10 : i32, message = "bqk,bkd->bqd"}> : () -> ()
    %cst_9 = arith.constant dense<0.000000e+00> : vector<8x8x8xf32>
    %43 = tpu.matmul %39, %33, %cst_9 {dimension_numbers = #tpu.dot_dimension_numbers<[2], [1], [1], [2], [0, 0, 0, 1, 1, 2], [0], [0]>} : vector<8x8x8xf32>, vector<8x8x8xf32>, vector<8x8x8xf32> -> vector<8x8x8xf32>
    "tpu.trace_stop"() : () -> ()
    %44 = vector.broadcast %42 : vector<8x8x1xf32> to vector<8x8x8xf32>
    %45 = arith.mulf %43, %44 : vector<8x8x8xf32>
    %46 = vector.extract_strided_slice %45 {offsets = [0, 0, 0], sizes = [2, 8, 8], strides = [1, 1, 1]} : vector<8x8x8xf32> to vector<2x8x8xf32>
    %47 = vector.extract_strided_slice %45 {offsets = [2, 0, 0], sizes = [2, 8, 8], strides = [1, 1, 1]} : vector<8x8x8xf32> to vector<2x8x8xf32>
    %48 = vector.extract_strided_slice %45 {offsets = [4, 0, 0], sizes = [2, 8, 8], strides = [1, 1, 1]} : vector<8x8x8xf32> to vector<2x8x8xf32>
    %49 = vector.extract_strided_slice %45 {offsets = [6, 0, 0], sizes = [2, 8, 8], strides = [1, 1, 1]} : vector<8x8x8xf32> to vector<2x8x8xf32>
    %50 = tpu.concatenate %46, %47, %48, %49 in 2 : vector<2x8x8xf32>, vector<2x8x8xf32>, vector<2x8x8xf32>, vector<2x8x8xf32> -> vector<2x8x32xf32>
    %c0_10 = arith.constant 0 : index
    %c0_11 = arith.constant 0 : index
    %c0_12 = arith.constant 0 : index
    %51 = vector.load %arg4[%c0_10, %c0_11, %c0_12] : memref<2x8x32xf32, #tpu.memory_space<vmem>>, vector<2x8x32xf32>
    tpu.vector_store %arg4[%c0_10, %c0_11, %c0_12], %50 {strides = array<i32>} : memref<2x8x32xf32, #tpu.memory_space<vmem>>, vector<2x8x32xf32>,
    return
  }
  func.func @transform_0(%arg0: i32) -> (i32, i32, i32) {
    %c0_i32 = arith.constant 0 : i32
    %c0_i32_0 = arith.constant 0 : i32
    %c0_i32_1 = arith.constant 0 : i32
    return %arg0, %c0_i32, %c0_i32_0 : i32, i32, i32
  }
  func.func @transform_1(%arg0: i32) -> (i32, i32) {
    %c0_i32 = arith.constant 0 : i32
    %c0_i32_0 = arith.constant 0 : i32
    %c0_i32_1 = arith.constant 0 : i32
    return %c0_i32, %c0_i32_0 : i32, i32
  }
  func.func @transform_2(%arg0: i32) -> (i32, i32) {
    %c0_i32 = arith.constant 0 : i32
    %c0_i32_0 = arith.constant 0 : i32
    %c0_i32_1 = arith.constant 0 : i32
    return %c0_i32, %c0_i32_0 : i32, i32
  }
  func.func @transform_3(%arg0: i32) -> (i32, i32, i32) {
    %c0_i32 = arith.constant 0 : i32
    %c0_i32_0 = arith.constant 0 : i32
    %c0_i32_1 = arith.constant 0 : i32
    return %arg0, %c0_i32, %c0_i32_0 : i32, i32, i32
  }
}

</mosaic_0001>

<llo_original>
// kernel: tpu_custom_call.1
$region0: #{tpu_custom_call.1}
  #allocation0 [shape = 'u32[]', space=smem, size = 0x4, offset = 0x4, fixed_abs, tag = 'smem constant byte address 0x4 - core index']
  #allocation1 [shape = 'u32[144,128]{1,0:T(1,128)}', space=vmem, size = 0x12000, scoped, tag = 'internal scratch']
  %s0 = inlined_call_operand.hbm [shape: f32[2,8,32], index: 0, kind: input, shape index: {}]
  %s1 = inlined_call_operand.hbm [shape: f32[32,96], index: 1, kind: input, shape index: {}]
  %s2 = inlined_call_operand.vmem [shape: f32[1,96], index: 2, kind: input, shape index: {}]
  %s3 = inlined_call_operand.hbm [shape: f32[2,8,32], index: 3, kind: output, shape index: {}]
  %s4 = sld [smem:[#allocation0]]
  $region30: #{tpu_custom_call.1} parent=0
    _
  %s6 = ssub.s32 1, %s4
  %s7 = scalar_select 0, %s6, %s4
  $region1: #{tpu_custom_call.1} parent=0
    #allocation2 [shape = 'u8[8192]{0}', space=vmem, size = 0x2000, scoped, tag = 'input window, operand 0, single buffered']
    #allocation3 [shape = 's32[1]{0}', space=sflag, size = 0x4, scoped, tag = 'scoped memory for tpu_custom_call.1']
    #allocation4 [shape = 's32[1]{0}', space=sflag, size = 0x4, scoped, tag = 'scoped memory for tpu_custom_call.1']
    #allocation5 [shape = 'u8[16384]{0}', space=vmem, size = 0x4000, scoped, tag = 'input window, operand 1, single buffered']
    #allocation6 [shape = 's32[1]{0}', space=sflag, size = 0x4, scoped, tag = 'scoped memory for tpu_custom_call.1']
    #allocation7 [shape = 'u8[8192]{0}', space=vmem, size = 0x2000, scoped, tag = 'output window, operand 0, single buffered']
    %8 = vsyncpa [#allocation3], 0
    %9 = vsyncpa [#allocation6], 0
    %10 = vsyncpa [#allocation4], 0
    // Predicated region
    $region2: #{tpu_custom_call.1} parent=1 // pred_check
      _
    $region3: #{tpu_custom_call.1} parent=1 // pred_check_branch
      %12 = sbr.rel (0) target = $region5
    $region4: #{tpu_custom_call.1} parent=1 // pred_region
      %s14 = ssub.s32 256, 256
      %15 = vsyncadd [#allocation3], %s14
      %s16 = sshll.u32 [#allocation2], 4
      %s17 = int_to_ptr.vmem [resolvable:$true] %s16
      %22 = dma.hbm_to_vmem [thread:$0]  %s0, 256, %s17, [#allocation3], 128, 128, 8
    $region5: #{tpu_custom_call.1} parent=1 // pred_fallthru
      _
    // Predicated region
    $region6: #{tpu_custom_call.1} parent=1 // pred_check
      _
    $region7: #{tpu_custom_call.1} parent=1 // pred_check_branch
      %24 = sbr.rel (0) target = $region9
    $region8: #{tpu_custom_call.1} parent=1 // pred_region
      %s26 = ssub.s32 512, 512
      %27 = vsyncadd [#allocation6], %s26
      %s28 = sshll.u32 [#allocation5], 4
      %s29 = int_to_ptr.vmem [resolvable:$true] %s28
      %34 = dma.hbm_to_vmem [thread:$0]  %s1, 512, %s29, [#allocation6], 128, 128, 8
    $region9: #{tpu_custom_call.1} parent=1 // pred_fallthru
      _
    // Predicated region
    $region10: #{tpu_custom_call.1} parent=1 // pred_check
      _
    $region11: #{tpu_custom_call.1} parent=1 // pred_check_branch
      %36 = sbr.rel (0) target = $region13
    $region12: #{tpu_custom_call.1} parent=1 // pred_region
      _
    $region13: #{tpu_custom_call.1} parent=1 // pred_fallthru
      _
    // Predicated region
    $region14: #{tpu_custom_call.1} parent=1 // pred_check
      _
    $region15: #{tpu_custom_call.1} parent=1 // pred_check_branch
      %38 = sbr.rel (0) target = $region17
    $region16: #{tpu_custom_call.1} parent=1 // pred_region
      %39 = dma.done [#allocation3], 256
    $region17: #{tpu_custom_call.1} parent=1 // pred_fallthru
      _
    // Predicated region
    $region18: #{tpu_custom_call.1} parent=1 // pred_check
      _
    $region19: #{tpu_custom_call.1} parent=1 // pred_check_branch
      %41 = sbr.rel (0) target = $region21
    $region20: #{tpu_custom_call.1} parent=1 // pred_region
      %42 = dma.done [#allocation6], 512
    $region21: #{tpu_custom_call.1} parent=1 // pred_fallthru
      _
    %v43 = vld [vmem:[#allocation2] sm:$0xff]
    %v44 = vld [vmem:[#allocation2 + $0x8] sm:$0xff]
    %v45 = vld [vmem:[#allocation5] sm:$0xff]
    %v46 = vld [vmem:[#allocation5 + $0x8] sm:$0xff]
    %v47 = vld [vmem:[#allocation5 + $0x10] sm:$0xff]
    %v48 = vld [vmem:[#allocation5 + $0x18] sm:$0xff]
    %v49 = vld [vmem:[%s2] sm:$0x1]
    %v51 = vlaneseq
    %v52 = vshrl.u32 %v51, 7
    %v53 = vsub.s32 0, %v52
    %v54 = vrot.slane %v49, %v53
    %vm56 = vcmask 261120
    %v58 = vsel %vm56, %v43, 0
    %v61 = vsel %vm56, %v44, 0
    %63 = vmatprep.subr.mxu0 0.0
    %64 = vmatpush1.msra.mxu0 %v45
    %65 = vmatprep.subr.mxu0 0.0
    %66 = vmatpush1.msra.mxu0 %v46
    %67 = vmatprep.subr.mxu0 0.0
    %68 = vmatpush1.msra.mxu0 %v47
    %69 = vmatprep.subr.mxu0 0.0
    %70 = vmatpush1.msra.mxu0 %v48
    %71 = vmatprep.subr.mxu0 0.0
    %72 = vmatpush1.msra.mxu0 0.0
    %73 = vmatprep.subr.mxu0 0.0
    %74 = vmatpush1.msra.mxu0 0.0
    %75 = vmatprep.subr.mxu0 0.0
    %76 = vmatpush1.msra.mxu0 0.0
    %77 = vmatprep.subr.mxu0 0.0
    %78 = vmatpush1.msra.mxu0 0.0
    %79 = vmatprep.subr.mxu0 0.0
    %80 = vmatpush1.msra.mxu0 0.0
    %81 = vmatprep.subr.mxu0 0.0
    %82 = vmatpush1.msra.mxu0 0.0
    %83 = vmatprep.subr.mxu0 0.0
    %84 = vmatpush1.msra.mxu0 0.0
    %85 = vmatprep.subr.mxu0 0.0
    %86 = vmatpush1.msra.mxu0 0.0
    %87 = vmatprep.subr.mxu0 0.0
    %88 = vmatpush1.msra.mxu0 0.0
    %89 = vmatprep.subr.mxu0 0.0
    %90 = vmatpush1.msra.mxu0 0.0
    %91 = vmatprep.subr.mxu0 0.0
    %92 = vmatpush1.msra.mxu0 0.0
    %93 = vmatprep.subr.mxu0 0.0
    %94 = vmatpush1.msra.mxu0 0.0
    %95 = vmatprep.subr.mxu0 0.0
    %96 = vmatpush1.msra.mxu0 0.0
    %97 = vmatprep.subr.mxu0 0.0
    %98 = vmatpush1.msra.mxu0 0.0
    %99 = vmatprep.subr.mxu0 0.0
    %100 = vmatpush1.msra.mxu0 0.0
    %101 = vmatprep.subr.mxu0 0.0
    %102 = vmatpush1.msra.mxu0 0.0
    %103 = vmatprep.subr.mxu0 0.0
    %104 = vmatpush1.msra.mxu0 0.0
    %105 = vmatprep.subr.mxu0 0.0
    %106 = vmatpush1.msra.mxu0 0.0
    %107 = vmatprep.subr.mxu0 0.0
    %108 = vmatpush1.msra.mxu0 0.0
    %109 = vmatprep.subr.mxu0 0.0
    %110 = vmatpush1.msra.mxu0 0.0
    %111 = vmatprep.subr.mxu0 0.0
    %112 = vmatpush1.msra.mxu0 0.0
    %113 = vmatprep.subr.mxu0 0.0
    %114 = vmatpush1.msra.mxu0 0.0
    %115 = vmatprep.subr.mxu0 0.0
    %116 = vmatpush1.msra.mxu0 0.0
    %117 = vmatprep.subr.mxu0 0.0
    %118 = vmatpush1.msra.mxu0 0.0
    %119 = vmatprep.subr.mxu0 0.0
    %120 = vmatpush1.msra.mxu0 0.0
    %121 = vmatprep.subr.mxu0 0.0
    %122 = vmatpush1.msra.mxu0 0.0
    %123 = vmatprep.subr.mxu0 0.0
    %124 = vmatpush1.msra.mxu0 0.0
    %125 = vmatprep.subr.mxu0 0.0
    %126 = vmatpush1.msra.mxu0 0.0
    %127 = vmatprep.mubr.f32.mxu0 0.0
    %128 = vmatmul.mubr.f32.gmra.mrb[0].mxu0 %v58
    %v129 = vpop.f32.mrb[0].mxu0
    %v130 = vadd.f32 %v54, %v129
    %v131 = vpop.f32.mrb[0].mxu0
    %132 = vmatprep.mubr.f32.mxu0 0.0
    %133 = vmatmul.mubr.f32.gmra.mrb[0].mxu0 %v61
    %v134 = vpop.f32.mrb[0].mxu0
    %v135 = vadd.f32 %v54, %v134
    %v136 = vpop.f32.mrb[0].mxu0
    %137 = vdwg.mxu0
    %140 = vrot.lane.b32.xlu0 %v130, 120
    %v141 = vpop.permute.xlu0 %140
    %142 = vrot.lane.b32.xlu0 %v135, 120
    %v143 = vpop.permute.xlu0 %142
    %144 = vrot.lane.b32.xlu0 %v130, 112
    %v145 = vpop.permute.xlu0 %144
    %146 = vrot.lane.b32.xlu0 %v135, 112
    %v147 = vpop.permute.xlu0 %146
    %148 = vrot.lane.b32.xlu0 %v130, 104
    %v149 = vpop.permute.xlu0 %148
    %150 = vrot.lane.b32.xlu0 %v135, 104
    %v151 = vpop.permute.xlu0 %150
    %152 = vrot.lane.b32.xlu0 %v130, 96
    %v153 = vpop.permute.xlu0 %152
    %vm154 = vcmask 64512
    %v155 = vsel %vm154, %v130, 0
    %v157 = vsel %vm154, %v153, 0
    %159 = vmatprep.subr.mxu0 0.0
    %160 = vmatpush1.xpose.msra.mxu0 %v157
    %161 = vmatprep.subr.mxu0 0.0
    %162 = vmatpush1.xpose.msra.mxu0 0.0
    %163 = vmatprep.subr.mxu0 0.0
    %164 = vmatpush1.xpose.msra.mxu0 0.0
    %165 = vmatprep.subr.mxu0 0.0
    %166 = vmatpush1.xpose.msra.mxu0 0.0
    %167 = vmatprep.subr.mxu0 0.0
    %168 = vmatpush1.xpose.msra.mxu0 0.0
    %169 = vmatprep.subr.mxu0 0.0
    %170 = vmatpush1.xpose.msra.mxu0 0.0
    %171 = vmatprep.subr.mxu0 0.0
    %172 = vmatpush1.xpose.msra.mxu0 0.0
    %173 = vmatprep.subr.mxu0 0.0
    %174 = vmatpush1.xpose.msra.mxu0 0.0
    %175 = vmatprep.subr.mxu0 0.0
    %176 = vmatpush1.xpose.msra.mxu0 0.0
    %177 = vmatprep.subr.mxu0 0.0
    %178 = vmatpush1.xpose.msra.mxu0 0.0
    %179 = vmatprep.subr.mxu0 0.0
    %180 = vmatpush1.xpose.msra.mxu0 0.0
    %181 = vmatprep.subr.mxu0 0.0
    %182 = vmatpush1.xpose.msra.mxu0 0.0
    %183 = vmatprep.subr.mxu0 0.0
    %184 = vmatpush1.xpose.msra.mxu0 0.0
    %185 = vmatprep.subr.mxu0 0.0
    %186 = vmatpush1.xpose.msra.mxu0 0.0
    %187 = vmatprep.subr.mxu0 0.0
    %188 = vmatpush1.xpose.msra.mxu0 0.0
    %189 = vmatprep.subr.mxu0 0.0
    %190 = vmatpush1.xpose.msra.mxu0 0.0
    %191 = vmatprep.subr.mxu0 0.0
    %192 = vmatpush1.xpose.msra.mxu0 0.0
    %193 = vmatprep.subr.mxu0 0.0
    %194 = vmatpush1.xpose.msra.mxu0 0.0
    %195 = vmatprep.subr.mxu0 0.0
    %196 = vmatpush1.xpose.msra.mxu0 0.0
    %197 = vmatprep.subr.mxu0 0.0
    %198 = vmatpush1.xpose.msra.mxu0 0.0
    %199 = vmatprep.subr.mxu0 0.0
    %200 = vmatpush1.xpose.msra.mxu0 0.0
    %201 = vmatprep.subr.mxu0 0.0
    %202 = vmatpush1.xpose.msra.mxu0 0.0
    %203 = vmatprep.subr.mxu0 0.0
    %204 = vmatpush1.xpose.msra.mxu0 0.0
    %205 = vmatprep.subr.mxu0 0.0
    %206 = vmatpush1.xpose.msra.mxu0 0.0
    %207 = vmatprep.subr.mxu0 0.0
    %208 = vmatpush1.xpose.msra.mxu0 0.0
    %209 = vmatprep.subr.mxu0 0.0
    %210 = vmatpush1.xpose.msra.mxu0 0.0
    %211 = vmatprep.subr.mxu0 0.0
    %212 = vmatpush1.xpose.msra.mxu0 0.0
    %213 = vmatprep.subr.mxu0 0.0
    %214 = vmatpush1.xpose.msra.mxu0 0.0
    %215 = vmatprep.subr.mxu0 0.0
    %216 = vmatpush1.xpose.msra.mxu0 0.0
    %217 = vmatprep.subr.mxu0 0.0
    %218 = vmatpush1.xpose.msra.mxu0 0.0
    %219 = vmatprep.subr.mxu0 0.0
    %220 = vmatpush1.xpose.msra.mxu0 0.0
    %221 = vmatprep.subr.mxu0 0.0
    %222 = vmatpush1.xpose.msra.mxu0 0.0
    %223 = vmatprep.mubr.f32.mxu0 0.0
    %224 = vmatmul.mubr.f32.gmra.mrb[0].mxu0 %v155
    %v225 = vpop.f32.mrb[0].mxu0
    %v226 = vadd.f32 0.0, %v225
    %v227 = vpop.f32.mrb[0].mxu0
    %228 = vdwg.mxu0
    %229 = vrot.lane.b32.xlu0 %v135, 96
    %v230 = vpop.permute.xlu0 %229
    %v231 = vsel %vm154, %v135, 0
    %v233 = vsel %vm154, %v230, 0
    %235 = vmatprep.subr.mxu0 0.0
    %236 = vmatpush1.xpose.msra.mxu0 %v233
    %237 = vmatprep.subr.mxu0 0.0
    %238 = vmatpush1.xpose.msra.mxu0 0.0
    %239 = vmatprep.subr.mxu0 0.0
    %240 = vmatpush1.xpose.msra.mxu0 0.0
    %241 = vmatprep.subr.mxu0 0.0
    %242 = vmatpush1.xpose.msra.mxu0 0.0
    %243 = vmatprep.subr.mxu0 0.0
    %244 = vmatpush1.xpose.msra.mxu0 0.0
    %245 = vmatprep.subr.mxu0 0.0
    %246 = vmatpush1.xpose.msra.mxu0 0.0
    %247 = vmatprep.subr.mxu0 0.0
    %248 = vmatpush1.xpose.msra.mxu0 0.0
    %249 = vmatprep.subr.mxu0 0.0
    %250 = vmatpush1.xpose.msra.mxu0 0.0
    %251 = vmatprep.subr.mxu0 0.0
    %252 = vmatpush1.xpose.msra.mxu0 0.0
    %253 = vmatprep.subr.mxu0 0.0
    %254 = vmatpush1.xpose.msra.mxu0 0.0
    %255 = vmatprep.subr.mxu0 0.0
    %256 = vmatpush1.xpose.msra.mxu0 0.0
    %257 = vmatprep.subr.mxu0 0.0
    %258 = vmatpush1.xpose.msra.mxu0 0.0
    %259 = vmatprep.subr.mxu0 0.0
    %260 = vmatpush1.xpose.msra.mxu0 0.0
    %261 = vmatprep.subr.mxu0 0.0
    %262 = vmatpush1.xpose.msra.mxu0 0.0
    %263 = vmatprep.subr.mxu0 0.0
    %264 = vmatpush1.xpose.msra.mxu0 0.0
    %265 = vmatprep.subr.mxu0 0.0
    %266 = vmatpush1.xpose.msra.mxu0 0.0
    %267 = vmatprep.subr.mxu0 0.0
    %268 = vmatpush1.xpose.msra.mxu0 0.0
    %269 = vmatprep.subr.mxu0 0.0
    %270 = vmatpush1.xpose.msra.mxu0 0.0
    %271 = vmatprep.subr.mxu0 0.0
    %272 = vmatpush1.xpose.msra.mxu0 0.0
    %273 = vmatprep.subr.mxu0 0.0
    %274 = vmatpush1.xpose.msra.mxu0 0.0
    %275 = vmatprep.subr.mxu0 0.0
    %276 = vmatpush1.xpose.msra.mxu0 0.0
    %277 = vmatprep.subr.mxu0 0.0
    %278 = vmatpush1.xpose.msra.mxu0 0.0
    %279 = vmatprep.subr.mxu0 0.0
    %280 = vmatpush1.xpose.msra.mxu0 0.0
    %281 = vmatprep.subr.mxu0 0.0
    %282 = vmatpush1.xpose.msra.mxu0 0.0
    %283 = vmatprep.subr.mxu0 0.0
    %284 = vmatpush1.xpose.msra.mxu0 0.0
    %285 = vmatprep.subr.mxu0 0.0
    %286 = vmatpush1.xpose.msra.mxu0 0.0
    %287 = vmatprep.subr.mxu0 0.0
    %288 = vmatpush1.xpose.msra.mxu0 0.0
    %289 = vmatprep.subr.mxu0 0.0
    %290 = vmatpush1.xpose.msra.mxu0 0.0
    %291 = vmatprep.subr.mxu0 0.0
    %292 = vmatpush1.xpose.msra.mxu0 0.0
    %293 = vmatprep.subr.mxu0 0.0
    %294 = vmatpush1.xpose.msra.mxu0 0.0
    %295 = vmatprep.subr.mxu0 0.0
    %296 = vmatpush1.xpose.msra.mxu0 0.0
    %297 = vmatprep.subr.mxu0 0.0
    %298 = vmatpush1.xpose.msra.mxu0 0.0
    %299 = vmatprep.mubr.f32.mxu0 0.0
    %300 = vmatmul.mubr.f32.gmra.mrb[0].mxu0 %v231
    %v301 = vpop.f32.mrb[0].mxu0
    %v302 = vadd.f32 0.0, %v301
    %v303 = vpop.f32.mrb[0].mxu0
    %304 = vdwg.mxu0
    %305 = vrot.lane.b32.xlu0 %v141, 96
    %v306 = vpop.permute.xlu0 %305
    %v307 = vsel %vm154, %v141, 0
    %v309 = vsel %vm154, %v306, 0
    %311 = vmatprep.subr.mxu0 0.0
    %312 = vmatpush1.xpose.msra.mxu0 %v309
    %313 = vmatprep.subr.mxu0 0.0
    %314 = vmatpush1.xpose.msra.mxu0 0.0
    %315 = vmatprep.subr.mxu0 0.0
    %316 = vmatpush1.xpose.msra.mxu0 0.0
    %317 = vmatprep.subr.mxu0 0.0
    %318 = vmatpush1.xpose.msra.mxu0 0.0
    %319 = vmatprep.subr.mxu0 0.0
    %320 = vmatpush1.xpose.msra.mxu0 0.0
    %321 = vmatprep.subr.mxu0 0.0
    %322 = vmatpush1.xpose.msra.mxu0 0.0
    %323 = vmatprep.subr.mxu0 0.0
    %324 = vmatpush1.xpose.msra.mxu0 0.0
    %325 = vmatprep.subr.mxu0 0.0
    %326 = vmatpush1.xpose.msra.mxu0 0.0
    %327 = vmatprep.subr.mxu0 0.0
    %328 = vmatpush1.xpose.msra.mxu0 0.0
    %329 = vmatprep.subr.mxu0 0.0
    %330 = vmatpush1.xpose.msra.mxu0 0.0
    %331 = vmatprep.subr.mxu0 0.0
    %332 = vmatpush1.xpose.msra.mxu0 0.0
    %333 = vmatprep.subr.mxu0 0.0
    %334 = vmatpush1.xpose.msra.mxu0 0.0
    %335 = vmatprep.subr.mxu0 0.0
    %336 = vmatpush1.xpose.msra.mxu0 0.0
    %337 = vmatprep.subr.mxu0 0.0
    %338 = vmatpush1.xpose.msra.mxu0 0.0
    %339 = vmatprep.subr.mxu0 0.0
    %340 = vmatpush1.xpose.msra.mxu0 0.0
    %341 = vmatprep.subr.mxu0 0.0
    %342 = vmatpush1.xpose.msra.mxu0 0.0
    %343 = vmatprep.subr.mxu0 0.0
    %344 = vmatpush1.xpose.msra.mxu0 0.0
    %345 = vmatprep.subr.mxu0 0.0
    %346 = vmatpush1.xpose.msra.mxu0 0.0
    %347 = vmatprep.subr.mxu0 0.0
    %348 = vmatpush1.xpose.msra.mxu0 0.0
    %349 = vmatprep.subr.mxu0 0.0
    %350 = vmatpush1.xpose.msra.mxu0 0.0
    %351 = vmatprep.subr.mxu0 0.0
    %352 = vmatpush1.xpose.msra.mxu0 0.0
    %353 = vmatprep.subr.mxu0 0.0
    %354 = vmatpush1.xpose.msra.mxu0 0.0
    %355 = vmatprep.subr.mxu0 0.0
    %356 = vmatpush1.xpose.msra.mxu0 0.0
    %357 = vmatprep.subr.mxu0 0.0
    %358 = vmatpush1.xpose.msra.mxu0 0.0
    %359 = vmatprep.subr.mxu0 0.0
    %360 = vmatpush1.xpose.msra.mxu0 0.0
    %361 = vmatprep.subr.mxu0 0.0
    %362 = vmatpush1.xpose.msra.mxu0 0.0
    %363 = vmatprep.subr.mxu0 0.0
    %364 = vmatpush1.xpose.msra.mxu0 0.0
    %365 = vmatprep.subr.mxu0 0.0
    %366 = vmatpush1.xpose.msra.mxu0 0.0
    %367 = vmatprep.subr.mxu0 0.0
    %368 = vmatpush1.xpose.msra.mxu0 0.0
    %369 = vmatprep.subr.mxu0 0.0
    %370 = vmatpush1.xpose.msra.mxu0 0.0
    %371 = vmatprep.subr.mxu0 0.0
    %372 = vmatpush1.xpose.msra.mxu0 0.0
    %373 = vmatprep.subr.mxu0 0.0
    %374 = vmatpush1.xpose.msra.mxu0 0.0
    %375 = vmatprep.mubr.f32.mxu0 0.0
    %376 = vmatmul.mubr.f32.gmra.mrb[0].mxu0 %v307
    %v377 = vpop.f32.mrb[0].mxu0
    %v378 = vadd.f32 0.0, %v377
    %v379 = vpop.f32.mrb[0].mxu0
    %380 = vdwg.mxu0
    %381 = vrot.lane.b32.xlu0 %v143, 96
    %v382 = vpop.permute.xlu0 %381
    %v383 = vsel %vm154, %v143, 0
    %v385 = vsel %vm154, %v382, 0
    %387 = vmatprep.subr.mxu0 0.0
    %388 = vmatpush1.xpose.msra.mxu0 %v385
    %389 = vmatprep.subr.mxu0 0.0
    %390 = vmatpush1.xpose.msra.mxu0 0.0
    %391 = vmatprep.subr.mxu0 0.0
    %392 = vmatpush1.xpose.msra.mxu0 0.0
    %393 = vmatprep.subr.mxu0 0.0
    %394 = vmatpush1.xpose.msra.mxu0 0.0
    %395 = vmatprep.subr.mxu0 0.0
    %396 = vmatpush1.xpose.msra.mxu0 0.0
    %397 = vmatprep.subr.mxu0 0.0
    %398 = vmatpush1.xpose.msra.mxu0 0.0
    %399 = vmatprep.subr.mxu0 0.0
    %400 = vmatpush1.xpose.msra.mxu0 0.0
    %401 = vmatprep.subr.mxu0 0.0
    %402 = vmatpush1.xpose.msra.mxu0 0.0
    %403 = vmatprep.subr.mxu0 0.0
    %404 = vmatpush1.xpose.msra.mxu0 0.0
    %405 = vmatprep.subr.mxu0 0.0
    %406 = vmatpush1.xpose.msra.mxu0 0.0
    %407 = vmatprep.subr.mxu0 0.0
    %408 = vmatpush1.xpose.msra.mxu0 0.0
    %409 = vmatprep.subr.mxu0 0.0
    %410 = vmatpush1.xpose.msra.mxu0 0.0
    %411 = vmatprep.subr.mxu0 0.0
    %412 = vmatpush1.xpose.msra.mxu0 0.0
    %413 = vmatprep.subr.mxu0 0.0
    %414 = vmatpush1.xpose.msra.mxu0 0.0
    %415 = vmatprep.subr.mxu0 0.0
    %416 = vmatpush1.xpose.msra.mxu0 0.0
    %417 = vmatprep.subr.mxu0 0.0
    %418 = vmatpush1.xpose.msra.mxu0 0.0
    %419 = vmatprep.subr.mxu0 0.0
    %420 = vmatpush1.xpose.msra.mxu0 0.0
    %421 = vmatprep.subr.mxu0 0.0
    %422 = vmatpush1.xpose.msra.mxu0 0.0
    %423 = vmatprep.subr.mxu0 0.0
    %424 = vmatpush1.xpose.msra.mxu0 0.0
    %425 = vmatprep.subr.mxu0 0.0
    %426 = vmatpush1.xpose.msra.mxu0 0.0
    %427 = vmatprep.subr.mxu0 0.0
    %428 = vmatpush1.xpose.msra.mxu0 0.0
    %429 = vmatprep.subr.mxu0 0.0
    %430 = vmatpush1.xpose.msra.mxu0 0.0
    %431 = vmatprep.subr.mxu0 0.0
    %432 = vmatpush1.xpose.msra.mxu0 0.0
    %433 = vmatprep.subr.mxu0 0.0
    %434 = vmatpush1.xpose.msra.mxu0 0.0
    %435 = vmatprep.subr.mxu0 0.0
    %436 = vmatpush1.xpose.msra.mxu0 0.0
    %437 = vmatprep.subr.mxu0 0.0
    %438 = vmatpush1.xpose.msra.mxu0 0.0
    %439 = vmatprep.subr.mxu0 0.0
    %440 = vmatpush1.xpose.msra.mxu0 0.0
    %441 = vmatprep.subr.mxu0 0.0
    %442 = vmatpush1.xpose.msra.mxu0 0.0
    %443 = vmatprep.subr.mxu0 0.0
    %444 = vmatpush1.xpose.msra.mxu0 0.0
    %445 = vmatprep.subr.mxu0 0.0
    %446 = vmatpush1.xpose.msra.mxu0 0.0
    %447 = vmatprep.subr.mxu0 0.0
    %448 = vmatpush1.xpose.msra.mxu0 0.0
    %449 = vmatprep.subr.mxu0 0.0
    %450 = vmatpush1.xpose.msra.mxu0 0.0
    %451 = vmatprep.mubr.f32.mxu0 0.0
    %452 = vmatmul.mubr.f32.gmra.mrb[0].mxu0 %v383
    %v453 = vpop.f32.mrb[0].mxu0
    %v454 = vadd.f32 0.0, %v453
    %v455 = vpop.f32.mrb[0].mxu0
    %456 = vdwg.mxu0
    %457 = vrot.lane.b32.xlu0 %v145, 96
    %v458 = vpop.permute.xlu0 %457
    %v459 = vsel %vm154, %v145, 0
    %v461 = vsel %vm154, %v458, 0
    %463 = vmatprep.subr.mxu0 0.0
    %464 = vmatpush1.xpose.msra.mxu0 %v461
    %465 = vmatprep.subr.mxu0 0.0
    %466 = vmatpush1.xpose.msra.mxu0 0.0
    %467 = vmatprep.subr.mxu0 0.0
    %468 = vmatpush1.xpose.msra.mxu0 0.0
    %469 = vmatprep.subr.mxu0 0.0
    %470 = vmatpush1.xpose.msra.mxu0 0.0
    %471 = vmatprep.subr.mxu0 0.0
    %472 = vmatpush1.xpose.msra.mxu0 0.0
    %473 = vmatprep.subr.mxu0 0.0
    %474 = vmatpush1.xpose.msra.mxu0 0.0
    %475 = vmatprep.subr.mxu0 0.0
    %476 = vmatpush1.xpose.msra.mxu0 0.0
    %477 = vmatprep.subr.mxu0 0.0
    %478 = vmatpush1.xpose.msra.mxu0 0.0
    %479 = vmatprep.subr.mxu0 0.0
    %480 = vmatpush1.xpose.msra.mxu0 0.0
    %481 = vmatprep.subr.mxu0 0.0
    %482 = vmatpush1.xpose.msra.mxu0 0.0
    %483 = vmatprep.subr.mxu0 0.0
    %484 = vmatpush1.xpose.msra.mxu0 0.0
    %485 = vmatprep.subr.mxu0 0.0
    %486 = vmatpush1.xpose.msra.mxu0 0.0
    %487 = vmatprep.subr.mxu0 0.0
    %488 = vmatpush1.xpose.msra.mxu0 0.0
    %489 = vmatprep.subr.mxu0 0.0
    %490 = vmatpush1.xpose.msra.mxu0 0.0
    %491 = vmatprep.subr.mxu0 0.0
    %492 = vmatpush1.xpose.msra.mxu0 0.0
    %493 = vmatprep.subr.mxu0 0.0
    %494 = vmatpush1.xpose.msra.mxu0 0.0
    %495 = vmatprep.subr.mxu0 0.0
    %496 = vmatpush1.xpose.msra.mxu0 0.0
    %497 = vmatprep.subr.mxu0 0.0
    %498 = vmatpush1.xpose.msra.mxu0 0.0
    %499 = vmatprep.subr.mxu0 0.0
    %500 = vmatpush1.xpose.msra.mxu0 0.0
    %501 = vmatprep.subr.mxu0 0.0
    %502 = vmatpush1.xpose.msra.mxu0 0.0
    %503 = vmatprep.subr.mxu0 0.0
    %504 = vmatpush1.xpose.msra.mxu0 0.0
    %505 = vmatprep.subr.mxu0 0.0
    %506 = vmatpush1.xpose.msra.mxu0 0.0
    %507 = vmatprep.subr.mxu0 0.0
    %508 = vmatpush1.xpose.msra.mxu0 0.0
    %509 = vmatprep.subr.mxu0 0.0
    %510 = vmatpush1.xpose.msra.mxu0 0.0
    %511 = vmatprep.subr.mxu0 0.0
    %512 = vmatpush1.xpose.msra.mxu0 0.0
    %513 = vmatprep.subr.mxu0 0.0
    %514 = vmatpush1.xpose.msra.mxu0 0.0
    %515 = vmatprep.subr.mxu0 0.0
    %516 = vmatpush1.xpose.msra.mxu0 0.0
    %517 = vmatprep.subr.mxu0 0.0
    %518 = vmatpush1.xpose.msra.mxu0 0.0
    %519 = vmatprep.subr.mxu0 0.0
    %520 = vmatpush1.xpose.msra.mxu0 0.0
    %521 = vmatprep.subr.mxu0 0.0
    %522 = vmatpush1.xpose.msra.mxu0 0.0
    %523 = vmatprep.subr.mxu0 0.0
    %524 = vmatpush1.xpose.msra.mxu0 0.0
    %525 = vmatprep.subr.mxu0 0.0
    %526 = vmatpush1.xpose.msra.mxu0 0.0
    %527 = vmatprep.mubr.f32.mxu0 0.0
    %528 = vmatmul.mubr.f32.gmra.mrb[0].mxu0 %v459
    %v529 = vpop.f32.mrb[0].mxu0
    %v530 = vadd.f32 0.0, %v529
    %v531 = vpop.f32.mrb[0].mxu0
    %532 = vdwg.mxu0
    %533 = vrot.lane.b32.xlu0 %v147, 96
    %v534 = vpop.permute.xlu0 %533
    %v535 = vsel %vm154, %v147, 0
    %v537 = vsel %vm154, %v534, 0
    %539 = vmatprep.subr.mxu0 0.0
    %540 = vmatpush1.xpose.msra.mxu0 %v537
    %541 = vmatprep.subr.mxu0 0.0
    %542 = vmatpush1.xpose.msra.mxu0 0.0
    %543 = vmatprep.subr.mxu0 0.0
    %544 = vmatpush1.xpose.msra.mxu0 0.0
    %545 = vmatprep.subr.mxu0 0.0
    %546 = vmatpush1.xpose.msra.mxu0 0.0
    %547 = vmatprep.subr.mxu0 0.0
    %548 = vmatpush1.xpose.msra.mxu0 0.0
    %549 = vmatprep.subr.mxu0 0.0
    %550 = vmatpush1.xpose.msra.mxu0 0.0
    %551 = vmatprep.subr.mxu0 0.0
    %552 = vmatpush1.xpose.msra.mxu0 0.0
    %553 = vmatprep.subr.mxu0 0.0
    %554 = vmatpush1.xpose.msra.mxu0 0.0
    %555 = vmatprep.subr.mxu0 0.0
    %556 = vmatpush1.xpose.msra.mxu0 0.0
    %557 = vmatprep.subr.mxu0 0.0
    %558 = vmatpush1.xpose.msra.mxu0 0.0
    %559 = vmatprep.subr.mxu0 0.0
    %560 = vmatpush1.xpose.msra.mxu0 0.0
    %561 = vmatprep.subr.mxu0 0.0
    %562 = vmatpush1.xpose.msra.mxu0 0.0
    %563 = vmatprep.subr.mxu0 0.0
    %564 = vmatpush1.xpose.msra.mxu0 0.0
    %565 = vmatprep.subr.mxu0 0.0
    %566 = vmatpush1.xpose.msra.mxu0 0.0
    %567 = vmatprep.subr.mxu0 0.0
    %568 = vmatpush1.xpose.msra.mxu0 0.0
    %569 = vmatprep.subr.mxu0 0.0
    %570 = vmatpush1.xpose.msra.mxu0 0.0
    %571 = vmatprep.subr.mxu0 0.0
    %572 = vmatpush1.xpose.msra.mxu0 0.0
    %573 = vmatprep.subr.mxu0 0.0
    %574 = vmatpush1.xpose.msra.mxu0 0.0
    %575 = vmatprep.subr.mxu0 0.0
    %576 = vmatpush1.xpose.msra.mxu0 0.0
    %577 = vmatprep.subr.mxu0 0.0
    %578 = vmatpush1.xpose.msra.mxu0 0.0
    %579 = vmatprep.subr.mxu0 0.0
    %580 = vmatpush1.xpose.msra.mxu0 0.0
    %581 = vmatprep.subr.mxu0 0.0
    %582 = vmatpush1.xpose.msra.mxu0 0.0
    %583 = vmatprep.subr.mxu0 0.0
    %584 = vmatpush1.xpose.msra.mxu0 0.0
    %585 = vmatprep.subr.mxu0 0.0
    %586 = vmatpush1.xpose.msra.mxu0 0.0
    %587 = vmatprep.subr.mxu0 0.0
    %588 = vmatpush1.xpose.msra.mxu0 0.0
    %589 = vmatprep.subr.mxu0 0.0
    %590 = vmatpush1.xpose.msra.mxu0 0.0
    %591 = vmatprep.subr.mxu0 0.0
    %592 = vmatpush1.xpose.msra.mxu0 0.0
    %593 = vmatprep.subr.mxu0 0.0
    %594 = vmatpush1.xpose.msra.mxu0 0.0
    %595 = vmatprep.subr.mxu0 0.0
    %596 = vmatpush1.xpose.msra.mxu0 0.0
    %597 = vmatprep.subr.mxu0 0.0
    %598 = vmatpush1.xpose.msra.mxu0 0.0
    %599 = vmatprep.subr.mxu0 0.0
    %600 = vmatpush1.xpose.msra.mxu0 0.0
    %601 = vmatprep.subr.mxu0 0.0
    %602 = vmatpush1.xpose.msra.mxu0 0.0
    %603 = vmatprep.mubr.f32.mxu0 0.0
    %604 = vmatmul.mubr.f32.gmra.mrb[0].mxu0 %v535
    %v605 = vpop.f32.mrb[0].mxu0
    %v606 = vadd.f32 0.0, %v605
    %v607 = vpop.f32.mrb[0].mxu0
    %608 = vdwg.mxu0
    %609 = vrot.lane.b32.xlu0 %v149, 96
    %v610 = vpop.permute.xlu0 %609
    %v611 = vsel %vm154, %v149, 0
    %v613 = vsel %vm154, %v610, 0
    %615 = vmatprep.subr.mxu0 0.0
    %616 = vmatpush1.xpose.msra.mxu0 %v613
    %617 = vmatprep.subr.mxu0 0.0
    %618 = vmatpush1.xpose.msra.mxu0 0.0
    %619 = vmatprep.subr.mxu0 0.0
    %620 = vmatpush1.xpose.msra.mxu0 0.0
    %621 = vmatprep.subr.mxu0 0.0
    %622 = vmatpush1.xpose.msra.mxu0 0.0
    %623 = vmatprep.subr.mxu0 0.0
    %624 = vmatpush1.xpose.msra.mxu0 0.0
    %625 = vmatprep.subr.mxu0 0.0
    %626 = vmatpush1.xpose.msra.mxu0 0.0
    %627 = vmatprep.subr.mxu0 0.0
    %628 = vmatpush1.xpose.msra.mxu0 0.0
    %629 = vmatprep.subr.mxu0 0.0
    %630 = vmatpush1.xpose.msra.mxu0 0.0
    %631 = vmatprep.subr.mxu0 0.0
    %632 = vmatpush1.xpose.msra.mxu0 0.0
    %633 = vmatprep.subr.mxu0 0.0
    %634 = vmatpush1.xpose.msra.mxu0 0.0
    %635 = vmatprep.subr.mxu0 0.0
    %636 = vmatpush1.xpose.msra.mxu0 0.0
    %637 = vmatprep.subr.mxu0 0.0
    %638 = vmatpush1.xpose.msra.mxu0 0.0
    %639 = vmatprep.subr.mxu0 0.0
    %640 = vmatpush1.xpose.msra.mxu0 0.0
    %641 = vmatprep.subr.mxu0 0.0
    %642 = vmatpush1.xpose.msra.mxu0 0.0
    %643 = vmatprep.subr.mxu0 0.0
    %644 = vmatpush1.xpose.msra.mxu0 0.0
    %645 = vmatprep.subr.mxu0 0.0
    %646 = vmatpush1.xpose.msra.mxu0 0.0
    %647 = vmatprep.subr.mxu0 0.0
    %648 = vmatpush1.xpose.msra.mxu0 0.0
    %649 = vmatprep.subr.mxu0 0.0
    %650 = vmatpush1.xpose.msra.mxu0 0.0
    %651 = vmatprep.subr.mxu0 0.0
    %652 = vmatpush1.xpose.msra.mxu0 0.0
    %653 = vmatprep.subr.mxu0 0.0
    %654 = vmatpush1.xpose.msra.mxu0 0.0
    %655 = vmatprep.subr.mxu0 0.0
    %656 = vmatpush1.xpose.msra.mxu0 0.0
    %657 = vmatprep.subr.mxu0 0.0
    %658 = vmatpush1.xpose.msra.mxu0 0.0
    %659 = vmatprep.subr.mxu0 0.0
    %660 = vmatpush1.xpose.msra.mxu0 0.0
    %661 = vmatprep.subr.mxu0 0.0
    %662 = vmatpush1.xpose.msra.mxu0 0.0
    %663 = vmatprep.subr.mxu0 0.0
    %664 = vmatpush1.xpose.msra.mxu0 0.0
    %665 = vmatprep.subr.mxu0 0.0
    %666 = vmatpush1.xpose.msra.mxu0 0.0
    %667 = vmatprep.subr.mxu0 0.0
    %668 = vmatpush1.xpose.msra.mxu0 0.0
    %669 = vmatprep.subr.mxu0 0.0
    %670 = vmatpush1.xpose.msra.mxu0 0.0
    %671 = vmatprep.subr.mxu0 0.0
    %672 = vmatpush1.xpose.msra.mxu0 0.0
    %673 = vmatprep.subr.mxu0 0.0
    %674 = vmatpush1.xpose.msra.mxu0 0.0
    %675 = vmatprep.subr.mxu0 0.0
    %676 = vmatpush1.xpose.msra.mxu0 0.0
    %677 = vmatprep.subr.mxu0 0.0
    %678 = vmatpush1.xpose.msra.mxu0 0.0
    %679 = vmatprep.mubr.f32.mxu0 0.0
    %680 = vmatmul.mubr.f32.gmra.mrb[0].mxu0 %v611
    %v681 = vpop.f32.mrb[0].mxu0
    %v682 = vadd.f32 0.0, %v681
    %v683 = vpop.f32.mrb[0].mxu0
    %684 = vdwg.mxu0
    %685 = vrot.lane.b32.xlu0 %v151, 96
    %v686 = vpop.permute.xlu0 %685
    %v687 = vsel %vm154, %v151, 0
    %v689 = vsel %vm154, %v686, 0
    %691 = vmatprep.subr.mxu0 0.0
    %692 = vmatpush1.xpose.msra.mxu0 %v689
    %693 = vmatprep.subr.mxu0 0.0
    %694 = vmatpush1.xpose.msra.mxu0 0.0
    %695 = vmatprep.subr.mxu0 0.0
    %696 = vmatpush1.xpose.msra.mxu0 0.0
    %697 = vmatprep.subr.mxu0 0.0
    %698 = vmatpush1.xpose.msra.mxu0 0.0
    %699 = vmatprep.subr.mxu0 0.0
    %700 = vmatpush1.xpose.msra.mxu0 0.0
    %701 = vmatprep.subr.mxu0 0.0
    %702 = vmatpush1.xpose.msra.mxu0 0.0
    %703 = vmatprep.subr.mxu0 0.0
    %704 = vmatpush1.xpose.msra.mxu0 0.0
    %705 = vmatprep.subr.mxu0 0.0
    %706 = vmatpush1.xpose.msra.mxu0 0.0
    %707 = vmatprep.subr.mxu0 0.0
    %708 = vmatpush1.xpose.msra.mxu0 0.0
    %709 = vmatprep.subr.mxu0 0.0
    %710 = vmatpush1.xpose.msra.mxu0 0.0
    %711 = vmatprep.subr.mxu0 0.0
    %712 = vmatpush1.xpose.msra.mxu0 0.0
    %713 = vmatprep.subr.mxu0 0.0
    %714 = vmatpush1.xpose.msra.mxu0 0.0
    %715 = vmatprep.subr.mxu0 0.0
    %716 = vmatpush1.xpose.msra.mxu0 0.0
    %717 = vmatprep.subr.mxu0 0.0
    %718 = vmatpush1.xpose.msra.mxu0 0.0
    %719 = vmatprep.subr.mxu0 0.0
    %720 = vmatpush1.xpose.msra.mxu0 0.0
    %721 = vmatprep.subr.mxu0 0.0
    %722 = vmatpush1.xpose.msra.mxu0 0.0
    %723 = vmatprep.subr.mxu0 0.0
    %724 = vmatpush1.xpose.msra.mxu0 0.0
    %725 = vmatprep.subr.mxu0 0.0
    %726 = vmatpush1.xpose.msra.mxu0 0.0
    %727 = vmatprep.subr.mxu0 0.0
    %728 = vmatpush1.xpose.msra.mxu0 0.0
    %729 = vmatprep.subr.mxu0 0.0
    %730 = vmatpush1.xpose.msra.mxu0 0.0
    %731 = vmatprep.subr.mxu0 0.0
    %732 = vmatpush1.xpose.msra.mxu0 0.0
    %733 = vmatprep.subr.mxu0 0.0
    %734 = vmatpush1.xpose.msra.mxu0 0.0
    %735 = vmatprep.subr.mxu0 0.0
    %736 = vmatpush1.xpose.msra.mxu0 0.0
    %737 = vmatprep.subr.mxu0 0.0
    %738 = vmatpush1.xpose.msra.mxu0 0.0
    %739 = vmatprep.subr.mxu0 0.0
    %740 = vmatpush1.xpose.msra.mxu0 0.0
    %741 = vmatprep.subr.mxu0 0.0
    %742 = vmatpush1.xpose.msra.mxu0 0.0
    %743 = vmatprep.subr.mxu0 0.0
    %744 = vmatpush1.xpose.msra.mxu0 0.0
    %745 = vmatprep.subr.mxu0 0.0
    %746 = vmatpush1.xpose.msra.mxu0 0.0
    %747 = vmatprep.subr.mxu0 0.0
    %748 = vmatpush1.xpose.msra.mxu0 0.0
    %749 = vmatprep.subr.mxu0 0.0
    %750 = vmatpush1.xpose.msra.mxu0 0.0
    %751 = vmatprep.subr.mxu0 0.0
    %752 = vmatpush1.xpose.msra.mxu0 0.0
    %753 = vmatprep.subr.mxu0 0.0
    %754 = vmatpush1.xpose.msra.mxu0 0.0
    %755 = vmatprep.mubr.f32.mxu0 0.0
    %756 = vmatmul.mubr.f32.gmra.mrb[0].mxu0 %v687
    %v757 = vpop.f32.mrb[0].mxu0
    %v758 = vadd.f32 0.0, %v757
    %v759 = vpop.f32.mrb[0].mxu0
    %760 = vdwg.mxu0
    %v761 = vsel %vm154, %v226, -inf
    %762 = vmax.xlane.f32.xlu0 %v761
    %v763 = vpop.xlane.xlu0 %762
    %v764 = vsel %vm154, %v302, -inf
    %765 = vmax.xlane.f32.xlu0 %v764
    %v766 = vpop.xlane.xlu0 %765
    %v767 = vsel %vm154, %v378, -inf
    %768 = vmax.xlane.f32.xlu0 %v767
    %v769 = vpop.xlane.xlu0 %768
    %v770 = vsel %vm154, %v454, -inf
    %771 = vmax.xlane.f32.xlu0 %v770
    %v772 = vpop.xlane.xlu0 %771
    %v773 = vsel %vm154, %v530, -inf
    %774 = vmax.xlane.f32.xlu0 %v773
    %v775 = vpop.xlane.xlu0 %774
    %v776 = vsel %vm154, %v606, -inf
    %777 = vmax.xlane.f32.xlu0 %v776
    %v778 = vpop.xlane.xlu0 %777
    %v779 = vsel %vm154, %v682, -inf
    %780 = vmax.xlane.f32.xlu0 %v779
    %v781 = vpop.xlane.xlu0 %780
    %v782 = vsel %vm154, %v758, -inf
    %783 = vmax.xlane.f32.xlu0 %v782
    %v784 = vpop.xlane.xlu0 %783
    %v785 = vsub.f32 %v226, %v763
    %v786 = vsub.f32 %v302, %v766
    %v787 = vsub.f32 %v378, %v769
    %v788 = vsub.f32 %v454, %v772
    %v789 = vsub.f32 %v530, %v775
    %v790 = vsub.f32 %v606, %v778
    %v791 = vsub.f32 %v682, %v781
    %v792 = vsub.f32 %v758, %v784
    %v793 = vmul.f32 %v785, 1.442695
    %v794 = vpow.pop %v793
    %v795 = vmul.f32 %v786, 1.442695
    %v796 = vpow.pop %v795
    %v797 = vmul.f32 %v787, 1.442695
    %v798 = vpow.pop %v797
    %v799 = vmul.f32 %v788, 1.442695
    %v800 = vpow.pop %v799
    %v801 = vmul.f32 %v789, 1.442695
    %v802 = vpow.pop %v801
    %v803 = vmul.f32 %v790, 1.442695
    %v804 = vpow.pop %v803
    %v805 = vmul.f32 %v791, 1.442695
    %v806 = vpow.pop %v805
    %v807 = vmul.f32 %v792, 1.442695
    %v808 = vpow.pop %v807
    %v809 = vsel %vm154, %v794, 0.0
    %810 = vadd.xlane.f32.xlu0 %v809
    %v811 = vpop.xlane.xlu0 %810
    %v812 = vsel %vm154, %v796, 0.0
    %813 = vadd.xlane.f32.xlu0 %v812
    %v814 = vpop.xlane.xlu0 %813
    %v815 = vsel %vm154, %v798, 0.0
    %816 = vadd.xlane.f32.xlu0 %v815
    %v817 = vpop.xlane.xlu0 %816
    %v818 = vsel %vm154, %v800, 0.0
    %819 = vadd.xlane.f32.xlu0 %v818
    %v820 = vpop.xlane.xlu0 %819
    %v821 = vsel %vm154, %v802, 0.0
    %822 = vadd.xlane.f32.xlu0 %v821
    %v823 = vpop.xlane.xlu0 %822
    %v824 = vsel %vm154, %v804, 0.0
    %825 = vadd.xlane.f32.xlu0 %v824
    %v826 = vpop.xlane.xlu0 %825
    %v827 = vsel %vm154, %v806, 0.0
    %828 = vadd.xlane.f32.xlu0 %v827
    %v829 = vpop.xlane.xlu0 %828
    %v830 = vsel %vm154, %v808, 0.0
    %831 = vadd.xlane.f32.xlu0 %v830
    %v832 = vpop.xlane.xlu0 %831
    %v833 = vrcp.pop %v811
    %v834 = vrcp.pop %v814
    %v835 = vrcp.pop %v817
    %v836 = vrcp.pop %v820
    %v837 = vrcp.pop %v823
    %v838 = vrcp.pop %v826
    %v839 = vrcp.pop %v829
    %v840 = vrcp.pop %v832
    %841 = vrot.lane.b32.xlu0 %v130, 64
    %v842 = vpop.permute.xlu0 %841
    %v845 = vsel %vm154, %v794, 0
    %847 = vmatprep.subr.mxu0 0.0
    %848 = vmatpush1.msra.mxu0 %v842
    %849 = vmatprep.subr.mxu0 0.0
    %850 = vmatpush1.msra.mxu0 0.0
    %851 = vmatprep.subr.mxu0 0.0
    %852 = vmatpush1.msra.mxu0 0.0
    %853 = vmatprep.subr.mxu0 0.0
    %854 = vmatpush1.msra.mxu0 0.0
    %855 = vmatprep.subr.mxu0 0.0
    %856 = vmatpush1.msra.mxu0 0.0
    %857 = vmatprep.subr.mxu0 0.0
    %858 = vmatpush1.msra.mxu0 0.0
    %859 = vmatprep.subr.mxu0 0.0
    %860 = vmatpush1.msra.mxu0 0.0
    %861 = vmatprep.subr.mxu0 0.0
    %862 = vmatpush1.msra.mxu0 0.0
    %863 = vmatprep.subr.mxu0 0.0
    %864 = vmatpush1.msra.mxu0 0.0
    %865 = vmatprep.subr.mxu0 0.0
    %866 = vmatpush1.msra.mxu0 0.0
    %867 = vmatprep.subr.mxu0 0.0
    %868 = vmatpush1.msra.mxu0 0.0
    %869 = vmatprep.subr.mxu0 0.0
    %870 = vmatpush1.msra.mxu0 0.0
    %871 = vmatprep.subr.mxu0 0.0
    %872 = vmatpush1.msra.mxu0 0.0
    %873 = vmatprep.subr.mxu0 0.0
    %874 = vmatpush1.msra.mxu0 0.0
    %875 = vmatprep.subr.mxu0 0.0
    %876 = vmatpush1.msra.mxu0 0.0
    %877 = vmatprep.subr.mxu0 0.0
    %878 = vmatpush1.msra.mxu0 0.0
    %879 = vmatprep.subr.mxu0 0.0
    %880 = vmatpush1.msra.mxu0 0.0
    %881 = vmatprep.subr.mxu0 0.0
    %882 = vmatpush1.msra.mxu0 0.0
    %883 = vmatprep.subr.mxu0 0.0
    %884 = vmatpush1.msra.mxu0 0.0
    %885 = vmatprep.subr.mxu0 0.0
    %886 = vmatpush1.msra.mxu0 0.0
    %887 = vmatprep.subr.mxu0 0.0
    %888 = vmatpush1.msra.mxu0 0.0
    %889 = vmatprep.subr.mxu0 0.0
    %890 = vmatpush1.msra.mxu0 0.0
    %891 = vmatprep.subr.mxu0 0.0
    %892 = vmatpush1.msra.mxu0 0.0
    %893 = vmatprep.subr.mxu0 0.0
    %894 = vmatpush1.msra.mxu0 0.0
    %895 = vmatprep.subr.mxu0 0.0
    %896 = vmatpush1.msra.mxu0 0.0
    %897 = vmatprep.subr.mxu0 0.0
    %898 = vmatpush1.msra.mxu0 0.0
    %899 = vmatprep.subr.mxu0 0.0
    %900 = vmatpush1.msra.mxu0 0.0
    %901 = vmatprep.subr.mxu0 0.0
    %902 = vmatpush1.msra.mxu0 0.0
    %903 = vmatprep.subr.mxu0 0.0
    %904 = vmatpush1.msra.mxu0 0.0
    %905 = vmatprep.subr.mxu0 0.0
    %906 = vmatpush1.msra.mxu0 0.0
    %907 = vmatprep.subr.mxu0 0.0
    %908 = vmatpush1.msra.mxu0 0.0
    %909 = vmatprep.subr.mxu0 0.0
    %910 = vmatpush1.msra.mxu0 0.0
    %911 = vmatprep.mubr.f32.mxu0 0.0
    %912 = vmatmul.mubr.f32.gmra.mrb[0].mxu0 %v845
    %v913 = vpop.f32.mrb[0].mxu0
    %v914 = vadd.f32 0.0, %v913
    %v915 = vpop.f32.mrb[0].mxu0
    %916 = vdwg.mxu0
    %917 = vrot.lane.b32.xlu0 %v135, 64
    %v918 = vpop.permute.xlu0 %917
    %v921 = vsel %vm154, %v796, 0
    %923 = vmatprep.subr.mxu0 0.0
    %924 = vmatpush1.msra.mxu0 %v918
    %925 = vmatprep.subr.mxu0 0.0
    %926 = vmatpush1.msra.mxu0 0.0
    %927 = vmatprep.subr.mxu0 0.0
    %928 = vmatpush1.msra.mxu0 0.0
    %929 = vmatprep.subr.mxu0 0.0
    %930 = vmatpush1.msra.mxu0 0.0
    %931 = vmatprep.subr.mxu0 0.0
    %932 = vmatpush1.msra.mxu0 0.0
    %933 = vmatprep.subr.mxu0 0.0
    %934 = vmatpush1.msra.mxu0 0.0
    %935 = vmatprep.subr.mxu0 0.0
    %936 = vmatpush1.msra.mxu0 0.0
    %937 = vmatprep.subr.mxu0 0.0
    %938 = vmatpush1.msra.mxu0 0.0
    %939 = vmatprep.subr.mxu0 0.0
    %940 = vmatpush1.msra.mxu0 0.0
    %941 = vmatprep.subr.mxu0 0.0
    %942 = vmatpush1.msra.mxu0 0.0
    %943 = vmatprep.subr.mxu0 0.0
    %944 = vmatpush1.msra.mxu0 0.0
    %945 = vmatprep.subr.mxu0 0.0
    %946 = vmatpush1.msra.mxu0 0.0
    %947 = vmatprep.subr.mxu0 0.0
    %948 = vmatpush1.msra.mxu0 0.0
    %949 = vmatprep.subr.mxu0 0.0
    %950 = vmatpush1.msra.mxu0 0.0
    %951 = vmatprep.subr.mxu0 0.0
    %952 = vmatpush1.msra.mxu0 0.0
    %953 = vmatprep.subr.mxu0 0.0
    %954 = vmatpush1.msra.mxu0 0.0
    %955 = vmatprep.subr.mxu0 0.0
    %956 = vmatpush1.msra.mxu0 0.0
    %957 = vmatprep.subr.mxu0 0.0
    %958 = vmatpush1.msra.mxu0 0.0
    %959 = vmatprep.subr.mxu0 0.0
    %960 = vmatpush1.msra.mxu0 0.0
    %961 = vmatprep.subr.mxu0 0.0
    %962 = vmatpush1.msra.mxu0 0.0
    %963 = vmatprep.subr.mxu0 0.0
    %964 = vmatpush1.msra.mxu0 0.0
    %965 = vmatprep.subr.mxu0 0.0
    %966 = vmatpush1.msra.mxu0 0.0
    %967 = vmatprep.subr.mxu0 0.0
    %968 = vmatpush1.msra.mxu0 0.0
    %969 = vmatprep.subr.mxu0 0.0
    %970 = vmatpush1.msra.mxu0 0.0
    %971 = vmatprep.subr.mxu0 0.0
    %972 = vmatpush1.msra.mxu0 0.0
    %973 = vmatprep.subr.mxu0 0.0
    %974 = vmatpush1.msra.mxu0 0.0
    %975 = vmatprep.subr.mxu0 0.0
    %976 = vmatpush1.msra.mxu0 0.0
    %977 = vmatprep.subr.mxu0 0.0
    %978 = vmatpush1.msra.mxu0 0.0
    %979 = vmatprep.subr.mxu0 0.0
    %980 = vmatpush1.msra.mxu0 0.0
    %981 = vmatprep.subr.mxu0 0.0
    %982 = vmatpush1.msra.mxu0 0.0
    %983 = vmatprep.subr.mxu0 0.0
    %984 = vmatpush1.msra.mxu0 0.0
    %985 = vmatprep.subr.mxu0 0.0
    %986 = vmatpush1.msra.mxu0 0.0
    %987 = vmatprep.mubr.f32.mxu0 0.0
    %988 = vmatmul.mubr.f32.gmra.mrb[0].mxu0 %v921
    %v989 = vpop.f32.mrb[0].mxu0
    %v990 = vadd.f32 0.0, %v989
    %v991 = vpop.f32.mrb[0].mxu0
    %992 = vdwg.mxu0
    %993 = vrot.lane.b32.xlu0 %v141, 64
    %v994 = vpop.permute.xlu0 %993
    %v997 = vsel %vm154, %v798, 0
    %999 = vmatprep.subr.mxu0 0.0
    %1000 = vmatpush1.msra.mxu0 %v994
    %1001 = vmatprep.subr.mxu0 0.0
    %1002 = vmatpush1.msra.mxu0 0.0
    %1003 = vmatprep.subr.mxu0 0.0
    %1004 = vmatpush1.msra.mxu0 0.0
    %1005 = vmatprep.subr.mxu0 0.0
    %1006 = vmatpush1.msra.mxu0 0.0
    %1007 = vmatprep.subr.mxu0 0.0
    %1008 = vmatpush1.msra.mxu0 0.0
    %1009 = vmatprep.subr.mxu0 0.0
    %1010 = vmatpush1.msra.mxu0 0.0
    %1011 = vmatprep.subr.mxu0 0.0
    %1012 = vmatpush1.msra.mxu0 0.0
    %1013 = vmatprep.subr.mxu0 0.0
    %1014 = vmatpush1.msra.mxu0 0.0
    %1015 = vmatprep.subr.mxu0 0.0
    %1016 = vmatpush1.msra.mxu0 0.0
    %1017 = vmatprep.subr.mxu0 0.0
    %1018 = vmatpush1.msra.mxu0 0.0
    %1019 = vmatprep.subr.mxu0 0.0
    %1020 = vmatpush1.msra.mxu0 0.0
    %1021 = vmatprep.subr.mxu0 0.0
    %1022 = vmatpush1.msra.mxu0 0.0
    %1023 = vmatprep.subr.mxu0 0.0
    %1024 = vmatpush1.msra.mxu0 0.0
    %1025 = vmatprep.subr.mxu0 0.0
    %1026 = vmatpush1.msra.mxu0 0.0
    %1027 = vmatprep.subr.mxu0 0.0
    %1028 = vmatpush1.msra.mxu0 0.0
    %1029 = vmatprep.subr.mxu0 0.0
    %1030 = vmatpush1.msra.mxu0 0.0
    %1031 = vmatprep.subr.mxu0 0.0
    %1032 = vmatpush1.msra.mxu0 0.0
    %1033 = vmatprep.subr.mxu0 0.0
    %1034 = vmatpush1.msra.mxu0 0.0
    %1035 = vmatprep.subr.mxu0 0.0
    %1036 = vmatpush1.msra.mxu0 0.0
    %1037 = vmatprep.subr.mxu0 0.0
    %1038 = vmatpush1.msra.mxu0 0.0
    %1039 = vmatprep.subr.mxu0 0.0
    %1040 = vmatpush1.msra.mxu0 0.0
    %1041 = vmatprep.subr.mxu0 0.0
    %1042 = vmatpush1.msra.mxu0 0.0
    %1043 = vmatprep.subr.mxu0 0.0
    %1044 = vmatpush1.msra.mxu0 0.0
    %1045 = vmatprep.subr.mxu0 0.0
    %1046 = vmatpush1.msra.mxu0 0.0
    %1047 = vmatprep.subr.mxu0 0.0
    %1048 = vmatpush1.msra.mxu0 0.0
    %1049 = vmatprep.subr.mxu0 0.0
    %1050 = vmatpush1.msra.mxu0 0.0
    %1051 = vmatprep.subr.mxu0 0.0
    %1052 = vmatpush1.msra.mxu0 0.0
    %1053 = vmatprep.subr.mxu0 0.0
    %1054 = vmatpush1.msra.mxu0 0.0
    %1055 = vmatprep.subr.mxu0 0.0
    %1056 = vmatpush1.msra.mxu0 0.0
    %1057 = vmatprep.subr.mxu0 0.0
    %1058 = vmatpush1.msra.mxu0 0.0
    %1059 = vmatprep.subr.mxu0 0.0
    %1060 = vmatpush1.msra.mxu0 0.0
    %1061 = vmatprep.subr.mxu0 0.0
    %1062 = vmatpush1.msra.mxu0 0.0
    %1063 = vmatprep.mubr.f32.mxu0 0.0
    %1064 = vmatmul.mubr.f32.gmra.mrb[0].mxu0 %v997
    %v1065 = vpop.f32.mrb[0].mxu0
    %v1066 = vadd.f32 0.0, %v1065
    %v1067 = vpop.f32.mrb[0].mxu0
    %1068 = vdwg.mxu0
    %1069 = vrot.lane.b32.xlu0 %v143, 64
    %v1070 = vpop.permute.xlu0 %1069
    %v1073 = vsel %vm154, %v800, 0
    %1075 = vmatprep.subr.mxu0 0.0
    %1076 = vmatpush1.msra.mxu0 %v1070
    %1077 = vmatprep.subr.mxu0 0.0
    %1078 = vmatpush1.msra.mxu0 0.0
    %1079 = vmatprep.subr.mxu0 0.0
    %1080 = vmatpush1.msra.mxu0 0.0
    %1081 = vmatprep.subr.mxu0 0.0
    %1082 = vmatpush1.msra.mxu0 0.0
    %1083 = vmatprep.subr.mxu0 0.0
    %1084 = vmatpush1.msra.mxu0 0.0
    %1085 = vmatprep.subr.mxu0 0.0
    %1086 = vmatpush1.msra.mxu0 0.0
    %1087 = vmatprep.subr.mxu0 0.0
    %1088 = vmatpush1.msra.mxu0 0.0
    %1089 = vmatprep.subr.mxu0 0.0
    %1090 = vmatpush1.msra.mxu0 0.0
    %1091 = vmatprep.subr.mxu0 0.0
    %1092 = vmatpush1.msra.mxu0 0.0
    %1093 = vmatprep.subr.mxu0 0.0
    %1094 = vmatpush1.msra.mxu0 0.0
    %1095 = vmatprep.subr.mxu0 0.0
    %1096 = vmatpush1.msra.mxu0 0.0
    %1097 = vmatprep.subr.mxu0 0.0
    %1098 = vmatpush1.msra.mxu0 0.0
    %1099 = vmatprep.subr.mxu0 0.0
    %1100 = vmatpush1.msra.mxu0 0.0
    %1101 = vmatprep.subr.mxu0 0.0
    %1102 = vmatpush1.msra.mxu0 0.0
    %1103 = vmatprep.subr.mxu0 0.0
    %1104 = vmatpush1.msra.mxu0 0.0
    %1105 = vmatprep.subr.mxu0 0.0
    %1106 = vmatpush1.msra.mxu0 0.0
    %1107 = vmatprep.subr.mxu0 0.0
    %1108 = vmatpush1.msra.mxu0 0.0
    %1109 = vmatprep.subr.mxu0 0.0
    %1110 = vmatpush1.msra.mxu0 0.0
    %1111 = vmatprep.subr.mxu0 0.0
    %1112 = vmatpush1.msra.mxu0 0.0
    %1113 = vmatprep.subr.mxu0 0.0
    %1114 = vmatpush1.msra.mxu0 0.0
    %1115 = vmatprep.subr.mxu0 0.0
    %1116 = vmatpush1.msra.mxu0 0.0
    %1117 = vmatprep.subr.mxu0 0.0
    %1118 = vmatpush1.msra.mxu0 0.0
    %1119 = vmatprep.subr.mxu0 0.0
    %1120 = vmatpush1.msra.mxu0 0.0
    %1121 = vmatprep.subr.mxu0 0.0
    %1122 = vmatpush1.msra.mxu0 0.0
    %1123 = vmatprep.subr.mxu0 0.0
    %1124 = vmatpush1.msra.mxu0 0.0
    %1125 = vmatprep.subr.mxu0 0.0
    %1126 = vmatpush1.msra.mxu0 0.0
    %1127 = vmatprep.subr.mxu0 0.0
    %1128 = vmatpush1.msra.mxu0 0.0
    %1129 = vmatprep.subr.mxu0 0.0
    %1130 = vmatpush1.msra.mxu0 0.0
    %1131 = vmatprep.subr.mxu0 0.0
    %1132 = vmatpush1.msra.mxu0 0.0
    %1133 = vmatprep.subr.mxu0 0.0
    %1134 = vmatpush1.msra.mxu0 0.0
    %1135 = vmatprep.subr.mxu0 0.0
    %1136 = vmatpush1.msra.mxu0 0.0
    %1137 = vmatprep.subr.mxu0 0.0
    %1138 = vmatpush1.msra.mxu0 0.0
    %1139 = vmatprep.mubr.f32.mxu0 0.0
    %1140 = vmatmul.mubr.f32.gmra.mrb[0].mxu0 %v1073
    %v1141 = vpop.f32.mrb[0].mxu0
    %v1142 = vadd.f32 0.0, %v1141
    %v1143 = vpop.f32.mrb[0].mxu0
    %1144 = vdwg.mxu0
    %1145 = vrot.lane.b32.xlu0 %v145, 64
    %v1146 = vpop.permute.xlu0 %1145
    %v1149 = vsel %vm154, %v802, 0
    %1151 = vmatprep.subr.mxu0 0.0
    %1152 = vmatpush1.msra.mxu0 %v1146
    %1153 = vmatprep.subr.mxu0 0.0
    %1154 = vmatpush1.msra.mxu0 0.0
    %1155 = vmatprep.subr.mxu0 0.0
    %1156 = vmatpush1.msra.mxu0 0.0
    %1157 = vmatprep.subr.mxu0 0.0
    %1158 = vmatpush1.msra.mxu0 0.0
    %1159 = vmatprep.subr.mxu0 0.0
    %1160 = vmatpush1.msra.mxu0 0.0
    %1161 = vmatprep.subr.mxu0 0.0
    %1162 = vmatpush1.msra.mxu0 0.0
    %1163 = vmatprep.subr.mxu0 0.0
    %1164 = vmatpush1.msra.mxu0 0.0
    %1165 = vmatprep.subr.mxu0 0.0
    %1166 = vmatpush1.msra.mxu0 0.0
    %1167 = vmatprep.subr.mxu0 0.0
    %1168 = vmatpush1.msra.mxu0 0.0
    %1169 = vmatprep.subr.mxu0 0.0
    %1170 = vmatpush1.msra.mxu0 0.0
    %1171 = vmatprep.subr.mxu0 0.0
    %1172 = vmatpush1.msra.mxu0 0.0
    %1173 = vmatprep.subr.mxu0 0.0
    %1174 = vmatpush1.msra.mxu0 0.0
    %1175 = vmatprep.subr.mxu0 0.0
    %1176 = vmatpush1.msra.mxu0 0.0
    %1177 = vmatprep.subr.mxu0 0.0
    %1178 = vmatpush1.msra.mxu0 0.0
    %1179 = vmatprep.subr.mxu0 0.0
    %1180 = vmatpush1.msra.mxu0 0.0
    %1181 = vmatprep.subr.mxu0 0.0
    %1182 = vmatpush1.msra.mxu0 0.0
    %1183 = vmatprep.subr.mxu0 0.0
    %1184 = vmatpush1.msra.mxu0 0.0
    %1185 = vmatprep.subr.mxu0 0.0
    %1186 = vmatpush1.msra.mxu0 0.0
    %1187 = vmatprep.subr.mxu0 0.0
    %1188 = vmatpush1.msra.mxu0 0.0
    %1189 = vmatprep.subr.mxu0 0.0
    %1190 = vmatpush1.msra.mxu0 0.0
    %1191 = vmatprep.subr.mxu0 0.0
    %1192 = vmatpush1.msra.mxu0 0.0
    %1193 = vmatprep.subr.mxu0 0.0
    %1194 = vmatpush1.msra.mxu0 0.0
    %1195 = vmatprep.subr.mxu0 0.0
    %1196 = vmatpush1.msra.mxu0 0.0
    %1197 = vmatprep.subr.mxu0 0.0
    %1198 = vmatpush1.msra.mxu0 0.0
    %1199 = vmatprep.subr.mxu0 0.0
    %1200 = vmatpush1.msra.mxu0 0.0
    %1201 = vmatprep.subr.mxu0 0.0
    %1202 = vmatpush1.msra.mxu0 0.0
    %1203 = vmatprep.subr.mxu0 0.0
    %1204 = vmatpush1.msra.mxu0 0.0
    %1205 = vmatprep.subr.mxu0 0.0
    %1206 = vmatpush1.msra.mxu0 0.0
    %1207 = vmatprep.subr.mxu0 0.0
    %1208 = vmatpush1.msra.mxu0 0.0
    %1209 = vmatprep.subr.mxu0 0.0
    %1210 = vmatpush1.msra.mxu0 0.0
    %1211 = vmatprep.subr.mxu0 0.0
    %1212 = vmatpush1.msra.mxu0 0.0
    %1213 = vmatprep.subr.mxu0 0.0
    %1214 = vmatpush1.msra.mxu0 0.0
    %1215 = vmatprep.mubr.f32.mxu0 0.0
    %1216 = vmatmul.mubr.f32.gmra.mrb[0].mxu0 %v1149
    %v1217 = vpop.f32.mrb[0].mxu0
    %v1218 = vadd.f32 0.0, %v1217
    %v1219 = vpop.f32.mrb[0].mxu0
    %1220 = vdwg.mxu0
    %1221 = vrot.lane.b32.xlu0 %v147, 64
    %v1222 = vpop.permute.xlu0 %1221
    %v1225 = vsel %vm154, %v804, 0
    %1227 = vmatprep.subr.mxu0 0.0
    %1228 = vmatpush1.msra.mxu0 %v1222
    %1229 = vmatprep.subr.mxu0 0.0
    %1230 = vmatpush1.msra.mxu0 0.0
    %1231 = vmatprep.subr.mxu0 0.0
    %1232 = vmatpush1.msra.mxu0 0.0
    %1233 = vmatprep.subr.mxu0 0.0
    %1234 = vmatpush1.msra.mxu0 0.0
    %1235 = vmatprep.subr.mxu0 0.0
    %1236 = vmatpush1.msra.mxu0 0.0
    %1237 = vmatprep.subr.mxu0 0.0
    %1238 = vmatpush1.msra.mxu0 0.0
    %1239 = vmatprep.subr.mxu0 0.0
    %1240 = vmatpush1.msra.mxu0 0.0
    %1241 = vmatprep.subr.mxu0 0.0
    %1242 = vmatpush1.msra.mxu0 0.0
    %1243 = vmatprep.subr.mxu0 0.0
    %1244 = vmatpush1.msra.mxu0 0.0
    %1245 = vmatprep.subr.mxu0 0.0
    %1246 = vmatpush1.msra.mxu0 0.0
    %1247 = vmatprep.subr.mxu0 0.0
    %1248 = vmatpush1.msra.mxu0 0.0
    %1249 = vmatprep.subr.mxu0 0.0
    %1250 = vmatpush1.msra.mxu0 0.0
    %1251 = vmatprep.subr.mxu0 0.0
    %1252 = vmatpush1.msra.mxu0 0.0
    %1253 = vmatprep.subr.mxu0 0.0
    %1254 = vmatpush1.msra.mxu0 0.0
    %1255 = vmatprep.subr.mxu0 0.0
    %1256 = vmatpush1.msra.mxu0 0.0
    %1257 = vmatprep.subr.mxu0 0.0
    %1258 = vmatpush1.msra.mxu0 0.0
    %1259 = vmatprep.subr.mxu0 0.0
    %1260 = vmatpush1.msra.mxu0 0.0
    %1261 = vmatprep.subr.mxu0 0.0
    %1262 = vmatpush1.msra.mxu0 0.0
    %1263 = vmatprep.subr.mxu0 0.0
    %1264 = vmatpush1.msra.mxu0 0.0
    %1265 = vmatprep.subr.mxu0 0.0
    %1266 = vmatpush1.msra.mxu0 0.0
    %1267 = vmatprep.subr.mxu0 0.0
    %1268 = vmatpush1.msra.mxu0 0.0
    %1269 = vmatprep.subr.mxu0 0.0
    %1270 = vmatpush1.msra.mxu0 0.0
    %1271 = vmatprep.subr.mxu0 0.0
    %1272 = vmatpush1.msra.mxu0 0.0
    %1273 = vmatprep.subr.mxu0 0.0
    %1274 = vmatpush1.msra.mxu0 0.0
    %1275 = vmatprep.subr.mxu0 0.0
    %1276 = vmatpush1.msra.mxu0 0.0
    %1277 = vmatprep.subr.mxu0 0.0
    %1278 = vmatpush1.msra.mxu0 0.0
    %1279 = vmatprep.subr.mxu0 0.0
    %1280 = vmatpush1.msra.mxu0 0.0
    %1281 = vmatprep.subr.mxu0 0.0
    %1282 = vmatpush1.msra.mxu0 0.0
    %1283 = vmatprep.subr.mxu0 0.0
    %1284 = vmatpush1.msra.mxu0 0.0
    %1285 = vmatprep.subr.mxu0 0.0
    %1286 = vmatpush1.msra.mxu0 0.0
    %1287 = vmatprep.subr.mxu0 0.0
    %1288 = vmatpush1.msra.mxu0 0.0
    %1289 = vmatprep.subr.mxu0 0.0
    %1290 = vmatpush1.msra.mxu0 0.0
    %1291 = vmatprep.mubr.f32.mxu0 0.0
    %1292 = vmatmul.mubr.f32.gmra.mrb[0].mxu0 %v1225
    %v1293 = vpop.f32.mrb[0].mxu0
    %v1294 = vadd.f32 0.0, %v1293
    %v1295 = vpop.f32.mrb[0].mxu0
    %1296 = vdwg.mxu0
    %1297 = vrot.lane.b32.xlu0 %v149, 64
    %v1298 = vpop.permute.xlu0 %1297
    %v1301 = vsel %vm154, %v806, 0
    %1303 = vmatprep.subr.mxu0 0.0
    %1304 = vmatpush1.msra.mxu0 %v1298
    %1305 = vmatprep.subr.mxu0 0.0
    %1306 = vmatpush1.msra.mxu0 0.0
    %1307 = vmatprep.subr.mxu0 0.0
    %1308 = vmatpush1.msra.mxu0 0.0
    %1309 = vmatprep.subr.mxu0 0.0
    %1310 = vmatpush1.msra.mxu0 0.0
    %1311 = vmatprep.subr.mxu0 0.0
    %1312 = vmatpush1.msra.mxu0 0.0
    %1313 = vmatprep.subr.mxu0 0.0
    %1314 = vmatpush1.msra.mxu0 0.0
    %1315 = vmatprep.subr.mxu0 0.0
    %1316 = vmatpush1.msra.mxu0 0.0
    %1317 = vmatprep.subr.mxu0 0.0
    %1318 = vmatpush1.msra.mxu0 0.0
    %1319 = vmatprep.subr.mxu0 0.0
    %1320 = vmatpush1.msra.mxu0 0.0
    %1321 = vmatprep.subr.mxu0 0.0
    %1322 = vmatpush1.msra.mxu0 0.0
    %1323 = vmatprep.subr.mxu0 0.0
    %1324 = vmatpush1.msra.mxu0 0.0
    %1325 = vmatprep.subr.mxu0 0.0
    %1326 = vmatpush1.msra.mxu0 0.0
    %1327 = vmatprep.subr.mxu0 0.0
    %1328 = vmatpush1.msra.mxu0 0.0
    %1329 = vmatprep.subr.mxu0 0.0
    %1330 = vmatpush1.msra.mxu0 0.0
    %1331 = vmatprep.subr.mxu0 0.0
    %1332 = vmatpush1.msra.mxu0 0.0
    %1333 = vmatprep.subr.mxu0 0.0
    %1334 = vmatpush1.msra.mxu0 0.0
    %1335 = vmatprep.subr.mxu0 0.0
    %1336 = vmatpush1.msra.mxu0 0.0
    %1337 = vmatprep.subr.mxu0 0.0
    %1338 = vmatpush1.msra.mxu0 0.0
    %1339 = vmatprep.subr.mxu0 0.0
    %1340 = vmatpush1.msra.mxu0 0.0
    %1341 = vmatprep.subr.mxu0 0.0
    %1342 = vmatpush1.msra.mxu0 0.0
    %1343 = vmatprep.subr.mxu0 0.0
    %1344 = vmatpush1.msra.mxu0 0.0
    %1345 = vmatprep.subr.mxu0 0.0
    %1346 = vmatpush1.msra.mxu0 0.0
    %1347 = vmatprep.subr.mxu0 0.0
    %1348 = vmatpush1.msra.mxu0 0.0
    %1349 = vmatprep.subr.mxu0 0.0
    %1350 = vmatpush1.msra.mxu0 0.0
    %1351 = vmatprep.subr.mxu0 0.0
    %1352 = vmatpush1.msra.mxu0 0.0
    %1353 = vmatprep.subr.mxu0 0.0
    %1354 = vmatpush1.msra.mxu0 0.0
    %1355 = vmatprep.subr.mxu0 0.0
    %1356 = vmatpush1.msra.mxu0 0.0
    %1357 = vmatprep.subr.mxu0 0.0
    %1358 = vmatpush1.msra.mxu0 0.0
    %1359 = vmatprep.subr.mxu0 0.0
    %1360 = vmatpush1.msra.mxu0 0.0
    %1361 = vmatprep.subr.mxu0 0.0
    %1362 = vmatpush1.msra.mxu0 0.0
    %1363 = vmatprep.subr.mxu0 0.0
    %1364 = vmatpush1.msra.mxu0 0.0
    %1365 = vmatprep.subr.mxu0 0.0
    %1366 = vmatpush1.msra.mxu0 0.0
    %1367 = vmatprep.mubr.f32.mxu0 0.0
    %1368 = vmatmul.mubr.f32.gmra.mrb[0].mxu0 %v1301
    %v1369 = vpop.f32.mrb[0].mxu0
    %v1370 = vadd.f32 0.0, %v1369
    %v1371 = vpop.f32.mrb[0].mxu0
    %1372 = vdwg.mxu0
    %1373 = vrot.lane.b32.xlu0 %v151, 64
    %v1374 = vpop.permute.xlu0 %1373
    %v1377 = vsel %vm154, %v808, 0
    %1379 = vmatprep.subr.mxu0 0.0
    %1380 = vmatpush1.msra.mxu0 %v1374
    %1381 = vmatprep.subr.mxu0 0.0
    %1382 = vmatpush1.msra.mxu0 0.0
    %1383 = vmatprep.subr.mxu0 0.0
    %1384 = vmatpush1.msra.mxu0 0.0
    %1385 = vmatprep.subr.mxu0 0.0
    %1386 = vmatpush1.msra.mxu0 0.0
    %1387 = vmatprep.subr.mxu0 0.0
    %1388 = vmatpush1.msra.mxu0 0.0
    %1389 = vmatprep.subr.mxu0 0.0
    %1390 = vmatpush1.msra.mxu0 0.0
    %1391 = vmatprep.subr.mxu0 0.0
    %1392 = vmatpush1.msra.mxu0 0.0
    %1393 = vmatprep.subr.mxu0 0.0
    %1394 = vmatpush1.msra.mxu0 0.0
    %1395 = vmatprep.subr.mxu0 0.0
    %1396 = vmatpush1.msra.mxu0 0.0
    %1397 = vmatprep.subr.mxu0 0.0
    %1398 = vmatpush1.msra.mxu0 0.0
    %1399 = vmatprep.subr.mxu0 0.0
    %1400 = vmatpush1.msra.mxu0 0.0
    %1401 = vmatprep.subr.mxu0 0.0
    %1402 = vmatpush1.msra.mxu0 0.0
    %1403 = vmatprep.subr.mxu0 0.0
    %1404 = vmatpush1.msra.mxu0 0.0
    %1405 = vmatprep.subr.mxu0 0.0
    %1406 = vmatpush1.msra.mxu0 0.0
    %1407 = vmatprep.subr.mxu0 0.0
    %1408 = vmatpush1.msra.mxu0 0.0
    %1409 = vmatprep.subr.mxu0 0.0
    %1410 = vmatpush1.msra.mxu0 0.0
    %1411 = vmatprep.subr.mxu0 0.0
    %1412 = vmatpush1.msra.mxu0 0.0
    %1413 = vmatprep.subr.mxu0 0.0
    %1414 = vmatpush1.msra.mxu0 0.0
    %1415 = vmatprep.subr.mxu0 0.0
    %1416 = vmatpush1.msra.mxu0 0.0
    %1417 = vmatprep.subr.mxu0 0.0
    %1418 = vmatpush1.msra.mxu0 0.0
    %1419 = vmatprep.subr.mxu0 0.0
    %1420 = vmatpush1.msra.mxu0 0.0
    %1421 = vmatprep.subr.mxu0 0.0
    %1422 = vmatpush1.msra.mxu0 0.0
    %1423 = vmatprep.subr.mxu0 0.0
    %1424 = vmatpush1.msra.mxu0 0.0
    %1425 = vmatprep.subr.mxu0 0.0
    %1426 = vmatpush1.msra.mxu0 0.0
    %1427 = vmatprep.subr.mxu0 0.0
    %1428 = vmatpush1.msra.mxu0 0.0
    %1429 = vmatprep.subr.mxu0 0.0
    %1430 = vmatpush1.msra.mxu0 0.0
    %1431 = vmatprep.subr.mxu0 0.0
    %1432 = vmatpush1.msra.mxu0 0.0
    %1433 = vmatprep.subr.mxu0 0.0
    %1434 = vmatpush1.msra.mxu0 0.0
    %1435 = vmatprep.subr.mxu0 0.0
    %1436 = vmatpush1.msra.mxu0 0.0
    %1437 = vmatprep.subr.mxu0 0.0
    %1438 = vmatpush1.msra.mxu0 0.0
    %1439 = vmatprep.subr.mxu0 0.0
    %1440 = vmatpush1.msra.mxu0 0.0
    %1441 = vmatprep.subr.mxu0 0.0
    %1442 = vmatpush1.msra.mxu0 0.0
    %1443 = vmatprep.mubr.f32.mxu0 0.0
    %1444 = vmatmul.mubr.f32.gmra.mrb[0].mxu0 %v1377
    %v1445 = vpop.f32.mrb[0].mxu0
    %v1446 = vadd.f32 0.0, %v1445
    %v1447 = vpop.f32.mrb[0].mxu0
    %1448 = vdwg.mxu0
    %v1449 = vmul.f32 %v914, %v833
    %v1450 = vmul.f32 %v990, %v834
    %v1451 = vmul.f32 %v1066, %v835
    %v1452 = vmul.f32 %v1142, %v836
    %v1453 = vmul.f32 %v1218, %v837
    %v1454 = vmul.f32 %v1294, %v838
    %v1455 = vmul.f32 %v1370, %v839
    %v1456 = vmul.f32 %v1446, %v840
    %1459 = vrot.lane.b32.xlu0 %v1451, 8
    %v1460 = vpop.permute.xlu0 %1459
    %1461 = vrot.lane.b32.xlu0 %v1452, 8
    %v1462 = vpop.permute.xlu0 %1461
    %1467 = vrot.lane.b32.xlu0 %v1453, 16
    %v1468 = vpop.permute.xlu0 %1467
    %1469 = vrot.lane.b32.xlu0 %v1454, 16
    %v1470 = vpop.permute.xlu0 %1469
    %1475 = vrot.lane.b32.xlu0 %v1455, 24
    %v1476 = vpop.permute.xlu0 %1475
    %1477 = vrot.lane.b32.xlu0 %v1456, 24
    %v1478 = vpop.permute.xlu0 %1477
    %v1481 = vsel %vm154, %v1449, %v1460
    %v1482 = vsel %vm154, %v1450, %v1462
    %vm1483 = vcmask 130048
    %v1484 = vsel %vm1483, %v1481, %v1468
    %v1485 = vsel %vm1483, %v1482, %v1470
    %vm1486 = vcmask 195584
    %v1487 = vsel %vm1486, %v1484, %v1476
    %v1488 = vsel %vm1486, %v1485, %v1478
    %1489 = vst.msk [vmem:[#allocation7] sm:$0xff] %vm56, %v1487
    %1490 = vst.msk [vmem:[#allocation7 + $0x8] sm:$0xff] %vm56, %v1488
    // Predicated region
    $region22: #{tpu_custom_call.1} parent=1 // pred_check
      _
    $region23: #{tpu_custom_call.1} parent=1 // pred_check_branch
      %1492 = sbr.rel (0) target = $region25
    $region24: #{tpu_custom_call.1} parent=1 // pred_region
      %s1494 = ssub.s32 256, 256
      %1495 = vsyncadd [#allocation4], %s1494
      %s1496 = sshll.u32 [#allocation7], 4
      %s1497 = int_to_ptr.vmem [resolvable:$true] %s1496
      %1502 = dma.vmem_to_hbm [thread:$0]  %s1497, 256, %s3, [#allocation4], 128, 128, 8
    $region25: #{tpu_custom_call.1} parent=1 // pred_fallthru
      _
    // Predicated region
    $region26: #{tpu_custom_call.1} parent=1 // pred_check
      _
    $region27: #{tpu_custom_call.1} parent=1 // pred_check_branch
      %1504 = sbr.rel (0) target = $region29
    $region28: #{tpu_custom_call.1} parent=1 // pred_region
      %1505 = dma.done [#allocation4], 256
    $region29: #{tpu_custom_call.1} parent=1 // pred_fallthru
      _
    %1506 = vsyncpa [#allocation3], 1
    %1507 = vsyncpa [#allocation6], 1
    %1508 = vsyncpa [#allocation4], 1

</llo_original>
